<compile_context>
chip_gen: v7x
topology: tpu7x:2x2x1
jax: 0.10.0
libtpu: 0.0.40
codegen_flags: <defaults>
</compile_context>

<pallas_src>
import functools

import jax
import jax.numpy as jnp
from jax.experimental import pallas as pl
from jax.experimental.pallas import tpu as pltpu

_EPS = 1e-5


def _round_up(v, m):
    return ((v + m - 1) // m) * m


def _full_spec(shape):
    nd = len(shape)
    return pl.BlockSpec(shape, lambda i, nd=nd: (0,) * nd)


def _upblock_kernel(x_ref, skip_ref, wup_ref, bup_ref, w1_ref, w2_ref,
                    g1_ref, b1_ref, g2_ref, b2_ref, o_ref, halo_ref,
                    *, seg_len, eps, inv_count, cdt):
    m = o_ref.shape[0]            # N * 2L rows (one row per output position)
    hp = skip_ref.shape[1]        # lane-padded width of the merged (skip|up) slab
    cp = o_ref.shape[1]           # lane-padded width of the conv output slabs
    f32 = jnp.float32

    # Batch-boundary masks computed in-kernel (no HBM mask inputs).
    pos = jax.lax.broadcasted_iota(jnp.int32, (m, 1), 0) % seg_len
    not_first = pos != 0
    not_last = pos != seg_len - 1

    # Zero the halo rows of the shift scratch once.
    zeros8 = jnp.zeros((8, hp), f32)
    halo_ref[0:8, :] = zeros8
    halo_ref[m + 8:m + 16, :] = zeros8

    def mm(a, w):
        return jnp.dot(a, w, preferred_element_type=f32)

    def shifted(src, width):
        # Row r of `src` is position p = r % seg_len of batch r // seg_len.
        # Return the p-1 / p+1 rows (the k=3, pad=1 halo), zeroed at batch
        # boundaries: one sublane-aligned store + two offset reads + selects.
        halo_ref[8:8 + m, 0:width] = src
        dn = jnp.where(not_first, halo_ref[7:7 + m, 0:width], 0.0)
        up = jnp.where(not_last, halo_ref[9:9 + m, 0:width], 0.0)
        return dn, up

    def bn_relu(y, gamma, beta):
        # BatchNorm1d with batch statistics (biased var) + ReLU.  Two-pass
        # mean/var in f32; rows are (batch, position) so the statistics are
        # plain per-column reductions (no even/odd folding needed).
        mean = jnp.sum(y, axis=0, keepdims=True) * inv_count
        d = y - mean
        var = jnp.maximum(jnp.sum(d * d, axis=0, keepdims=True) * inv_count, 0.0)
        scale = gamma * jax.lax.rsqrt(var + eps)
        return jnp.maximum(d * scale + beta, 0.0)

    # ConvTranspose1d(k=2, stride=2) + channel concat with skip.  The tap is
    # selected by the parity-encoded column block of x, and the upsampled
    # channels land in columns disjoint from the skip channels, so the
    # torch.cat becomes a plain add.
    h = skip_ref[...].astype(f32) + mm(x_ref[...], wup_ref[...]) + bup_ref[...]

    # Conv1d(2C -> C, k=3, pad=1): one K-fused MXU matmul over
    # [h(p-1) | h(p) | h(p+1)], then BN1 + ReLU.
    h_dn, h_up = shifted(h, hp)
    cat1 = jnp.concatenate(
        [h_dn.astype(cdt), h.astype(cdt), h_up.astype(cdt)], axis=1)
    y = bn_relu(mm(cat1, w1_ref[...]), g1_ref[...], b1_ref[...])

    # Conv1d(C -> C, k=3, pad=1) + BN2 + ReLU, same K-fused form.
    y_dn, y_up = shifted(y, cp)
    cat2 = jnp.concatenate(
        [y_dn.astype(cdt), y.astype(cdt), y_up.astype(cdt)], axis=1)
    o_ref[...] = bn_relu(mm(cat2, w2_ref[...]), g2_ref[...], b2_ref[...])


def _build_operands(x_ncl, skip_ncl, p, cdt):
    """Lane-dense row slabs + precombined, tap-stacked (K-fused) weights."""
    f32 = jnp.float32
    w_up = p['w_up'].astype(f32)          # (Cin, C, 2)  ConvTranspose1d weight
    b_up = p['b_up'].astype(f32)          # (C,)
    w1 = p['w1'].astype(f32)              # (C, 2C, 3)
    w2 = p['w2'].astype(f32)              # (C, C, 3)

    n, cin, l = x_ncl.shape
    c = w_up.shape[1]
    l2 = 2 * l
    m = n * l2

    cin_p = _round_up(cin, 128)
    hp = _round_up(2 * c, 128)            # merged (skip | up) slab width
    cp = _round_up(c, 128)                # conv output slab width
    xw = 2 * cin_p                        # parity-encoded upsample input width

    # x slab: row n*2L + p holds x[n, :, p//2]; the ConvTranspose tap is chosen
    # per parity by placing x in column block 0 (even p) or block 1 (odd p).
    x_t = jnp.transpose(x_ncl, (0, 2, 1)).astype(f32)              # (N, L, Cin)
    x_pad = jnp.pad(x_t, ((0, 0), (0, 0), (0, cin_p - cin)))
    zeros = jnp.zeros_like(x_pad)
    x2 = jnp.stack([jnp.concatenate([x_pad, zeros], axis=-1),
                    jnp.concatenate([zeros, x_pad], axis=-1)],
                   axis=2).reshape(m, xw).astype(cdt)

    # skip slab: row n*2L + p holds skip[n, :, p] in columns [0:C].
    skip_t = jnp.transpose(skip_ncl, (0, 2, 1)).astype(f32)        # (N, 2L, C)
    skip_slab = jnp.pad(skip_t, ((0, 0), (0, 0), (0, hp - c)))
    skip_slab = skip_slab.reshape(m, hp).astype(cdt)

    # ConvTranspose weights: upsampled channels live in columns [C:2C] of h.
    wup_full = jnp.zeros((xw, hp), f32)
    wup_full = wup_full.at[:cin, c:2 * c].set(w_up[:, :, 0])
    wup_full = wup_full.at[cin_p:cin_p + cin, c:2 * c].set(w_up[:, :, 1])
    bup_full = jnp.zeros((1, hp), f32).at[0, c:2 * c].set(b_up)

    def conv_weight(w, in_width):
        # (Cout, Cin, 3) -> (3 * in_width, cp): taps stacked along K so the
        # k=3 conv is a single matmul against [row p-1 | row p | row p+1].
        cout, cin_w, _ = w.shape
        blocks = [jnp.zeros((in_width, cp), f32)
                  .at[:cin_w, :cout].set(w[:, :, k].T) for k in range(3)]
        return jnp.concatenate(blocks, axis=0)

    def cvec(v):
        return jnp.zeros((1, cp), f32).at[0, :c].set(v.astype(f32))

    operands = (x2, skip_slab, wup_full.astype(cdt), bup_full,
                conv_weight(w1, hp).astype(cdt), conv_weight(w2, cp).astype(cdt),
                cvec(p['g1']), cvec(p['b1']), cvec(p['g2']), cvec(p['b2']))
    dims = dict(n=n, c=c, l2=l2, m=m, hp=hp, cp=cp, xw=xw)
    return operands, dims


def up_block_1d(x_ncl, skip_ncl, params, compute_dtype=jnp.bfloat16):
    """UpBlock1D forward (up_mode='transpose'); takes / returns PyTorch NCL.

    compute_dtype sets the MXU matmul-operand dtype (bf16 default for native
    MXU throughput; float32 reproduces the strict module semantics).  BN
    statistics, scale/shift and ReLU always run in f32.
    """
    operands, d = _build_operands(x_ncl, skip_ncl, params, compute_dtype)
    m, hp, cp, xw = d['m'], d['hp'], d['cp'], d['xw']

    # VMEM budget derived from the actual footprint (with headroom), instead
    # of a blind large request; floor 32 MiB, cap 100 MiB.
    esz = jnp.dtype(compute_dtype).itemsize
    est = 2 * m * ((xw + hp) * esz + cp * 4)                # pipelined I/O bufs
    est += (m + 16) * hp * 4                                # halo scratch
    est += m * hp * (3 * 4 + 3 * esz)                       # h, h_dn, h_up, cat1
    est += m * cp * (3 * 4 + 3 * esz)                       # y, d, cat2
    est += 2 * (xw * hp + 3 * hp * cp + 3 * cp * cp) * esz  # weight matrices
    vmem_limit = int(min(100 * 2 ** 20, max(32 * 2 ** 20, 2 * est)))

    kernel = functools.partial(
        _upblock_kernel, seg_len=d['l2'], eps=_EPS, inv_count=1.0 / m,
        cdt=compute_dtype)

    out = pl.pallas_call(
        kernel,
        out_shape=jax.ShapeDtypeStruct((m, cp), jnp.float32),
        grid=(1,),
        in_specs=[_full_spec(op.shape) for op in operands],
        out_specs=_full_spec((m, cp)),
        scratch_shapes=[pltpu.VMEM((m + 16, hp), jnp.float32)],
        compiler_params=pltpu.CompilerParams(
            dimension_semantics=("arbitrary",),
            vmem_limit_bytes=vmem_limit),
    )(*operands)

    out = out[:, :d['c']].reshape(d['n'], d['l2'], d['c'])
    return jnp.transpose(out, (0, 2, 1))                    # back to NCL


def _ref_forward(x, skip, p):
    # Independent pure-JAX reference (NCL layout, straight from the math).
    n, _, lin = x.shape
    cout = p['w_up'].shape[1]
    up = jnp.zeros((n, cout, 2 * lin), jnp.float32)
    for k in range(2):
        up = up.at[:, :, k::2].set(
            jnp.einsum('ncl,cd->ndl', x, p['w_up'][:, :, k]))
    up = up + p['b_up'][None, :, None]
    h = jnp.concatenate([skip, up], axis=1)

    def dconv(h, w, g, b):
        l = h.shape[2]
        hpad = jnp.pad(h, ((0, 0), (0, 0), (1, 1)))
        y = sum(jnp.einsum('ncl,dc->ndl', hpad[:, :, k:k + l], w[:, :, k])
                for k in range(3))
        mean = y.mean(axis=(0, 2), keepdims=True)
        var = ((y - mean) ** 2).mean(axis=(0, 2), keepdims=True)
        y = (y - mean) / jnp.sqrt(var + _EPS) * g[None, :, None] + b[None, :, None]
        return jnp.maximum(y, 0.0)

    h = dconv(h, p['w1'], p['g1'], p['b1'])
    h = dconv(h, p['w2'], p['g2'], p['b2'])
    return h


if __name__ == "__main__":
    N, C_in, C_out, L_in = 2, 8, 4, 16
    key = jax.random.PRNGKey(0)
    ks = jax.random.split(key, 10)
    params = {
        'w_up': 0.1 * jax.random.normal(ks[0], (C_in, C_out, 2), jnp.float32),
        'b_up': 0.1 * jax.random.normal(ks[1], (C_out,), jnp.float32),
        'w1': 0.1 * jax.random.normal(ks[2], (C_out, 2 * C_out, 3), jnp.float32),
        'g1': 1.0 + 0.1 * jax.random.normal(ks[3], (C_out,), jnp.float32),
        'b1': 0.1 * jax.random.normal(ks[4], (C_out,), jnp.float32),
        'w2': 0.1 * jax.random.normal(ks[5], (C_out, C_out, 3), jnp.float32),
        'g2': 1.0 + 0.1 * jax.random.normal(ks[6], (C_out,), jnp.float32),
        'b2': 0.1 * jax.random.normal(ks[7], (C_out,), jnp.float32),
    }
    x = jax.random.normal(ks[8], (N, C_in, L_in), jnp.float32)
    skip = jax.random.normal(ks[9], (N, C_out, 2 * L_in), jnp.float32)

    ref = _ref_forward(x, skip, params)

    # Strict-f32 path: reproduces the PyTorch module numerics.
    f32_fn = jax.jit(functools.partial(up_block_1d, compute_dtype=jnp.float32))
    out_f32 = jax.block_until_ready(f32_fn(x, skip, params))
    assert out_f32.shape == (N, C_out, 2 * L_in), out_f32.shape
    err_f32 = float(jnp.max(jnp.abs(out_f32 - ref)))
    assert err_f32 < 1e-3, err_f32

    # Default bf16-MXU path: native MXU throughput, f32 BN statistics.
    bf16_fn = jax.jit(up_block_1d)
    out_bf16 = jax.block_until_ready(bf16_fn(x, skip, params))
    assert out_bf16.shape == (N, C_out, 2 * L_in), out_bf16.shape
    err_bf16 = float(jnp.max(jnp.abs(out_bf16 - ref)))
    assert err_bf16 < 5e-2, err_bf16          # bf16-operand tolerance

    print("KERNEL_OK")
</pallas_src>

<mosaic_0001>
module attributes {stable_mosaic.version = 11 : i64} {
  func.func @_upblock_kernel(%arg0: i32, %arg1: memref<64x256xf32, #tpu.memory_space<vmem>>, %arg2: memref<64x128xf32, #tpu.memory_space<vmem>>, %arg3: memref<256x128xf32, #tpu.memory_space<vmem>>, %arg4: memref<1x128xf32, #tpu.memory_space<vmem>>, %arg5: memref<384x128xf32, #tpu.memory_space<vmem>>, %arg6: memref<384x128xf32, #tpu.memory_space<vmem>>, %arg7: memref<1x128xf32, #tpu.memory_space<vmem>>, %arg8: memref<1x128xf32, #tpu.memory_space<vmem>>, %arg9: memref<1x128xf32, #tpu.memory_space<vmem>>, %arg10: memref<1x128xf32, #tpu.memory_space<vmem>>, %arg11: memref<64x128xf32, #tpu.memory_space<vmem>>, %arg12: memref<80x128xf32, #tpu.memory_space<vmem>>) attributes {dimension_semantics = [#tpu.dimension_semantics<arbitrary>], iteration_bounds = array<i64: 1>, scalar_prefetch = 0 : i64, scratch_operands = 1 : i64, tpu.core_type = #tpu.core_type<tc>, window_params = [{pipeline_mode = #tpu.pipeline_mode<synchronous>, transform_indices = @transform_0, window_bounds = array<i64: 64, 256>}, {pipeline_mode = #tpu.pipeline_mode<synchronous>, transform_indices = @transform_1, window_bounds = array<i64: 64, 128>}, {pipeline_mode = #tpu.pipeline_mode<synchronous>, transform_indices = @transform_2, window_bounds = array<i64: 256, 128>}, {pipeline_mode = #tpu.pipeline_mode<synchronous>, transform_indices = @transform_3, window_bounds = array<i64: 1, 128>}, {pipeline_mode = #tpu.pipeline_mode<synchronous>, transform_indices = @transform_4, window_bounds = array<i64: 384, 128>}, {pipeline_mode = #tpu.pipeline_mode<synchronous>, transform_indices = @transform_5, window_bounds = array<i64: 384, 128>}, {pipeline_mode = #tpu.pipeline_mode<synchronous>, transform_indices = @transform_6, window_bounds = array<i64: 1, 128>}, {pipeline_mode = #tpu.pipeline_mode<synchronous>, transform_indices = @transform_7, window_bounds = array<i64: 1, 128>}, {pipeline_mode = #tpu.pipeline_mode<synchronous>, transform_indices = @transform_8, window_bounds = array<i64: 1, 128>}, {pipeline_mode = #tpu.pipeline_mode<synchronous>, transform_indices = @transform_9, window_bounds = array<i64: 1, 128>}, {pipeline_mode = #tpu.pipeline_mode<synchronous>, transform_indices = @transform_10, window_bounds = array<i64: 64, 128>}]} {
    %0 = tpu.iota {dimensions = array<i32: 0>} : vector<64x1xi32>
    %c32_i32 = arith.constant 32 : i32
    %c0_i32 = arith.constant 0 : i32
    %1 = arith.cmpi eq, %c32_i32, %c0_i32 : i32
    %c1_i32 = arith.constant 1 : i32
    %2 = arith.select %1, %c1_i32, %c32_i32 : i32
    %3 = vector.broadcast %2 : i32 to vector<64x1xi32>
    %4 = arith.remsi %0, %3 : vector<64x1xi32>
    %c0_i32_0 = arith.constant 0 : i32
    %5 = vector.broadcast %c0_i32_0 : i32 to vector<64x1xi32>
    %6 = arith.cmpi ne, %4, %5 : vector<64x1xi32>
    %c0_i32_1 = arith.constant 0 : i32
    %7 = vector.broadcast %c0_i32_1 : i32 to vector<64x1xi32>
    %8 = arith.cmpi slt, %4, %7 : vector<64x1xi32>
    %c0_i32_2 = arith.constant 0 : i32
    %9 = arith.cmpi slt, %2, %c0_i32_2 : i32
    %10 = vector.broadcast %9 : i1 to vector<64x1xi1>
    %11 = vector.broadcast %10 : vector<64x1xi1> to vector<64x1xi1>
    %12 = arith.xori %8, %11 : vector<64x1xi1>
    %13 = arith.andi %12, %6 : vector<64x1xi1>
    %14 = vector.broadcast %2 : i32 to vector<64x1xi32>
    %15 = arith.addi %4, %14 : vector<64x1xi32>
    %16 = arith.select %13, %15, %4 : vector<64x1xi1>, vector<64x1xi32>
    %c0_i32_3 = arith.constant 0 : i32
    %17 = vector.broadcast %c0_i32_3 : i32 to vector<64x1xi32>
    %18 = arith.cmpi ne, %16, %17 : vector<64x1xi32>
    %c31_i32 = arith.constant 31 : i32
    %19 = vector.broadcast %c31_i32 : i32 to vector<64x1xi32>
    %20 = arith.cmpi ne, %16, %19 : vector<64x1xi32>
    %cst = arith.constant 0.000000e+00 : f32
    %21 = vector.broadcast %cst : f32 to vector<8x128xf32>
    %c0 = arith.constant 0 : index
    %c0_4 = arith.constant 0 : index
    %22 = vector.load %arg12[%c0, %c0_4] : memref<80x128xf32, #tpu.memory_space<vmem>>, vector<8x128xf32>
    tpu.vector_store %arg12[%c0, %c0_4], %21 {strides = array<i32>} : memref<80x128xf32, #tpu.memory_space<vmem>>, vector<8x128xf32>,
    %c72 = arith.constant 72 : index
    %c0_5 = arith.constant 0 : index
    %23 = vector.load %arg12[%c72, %c0_5] : memref<80x128xf32, #tpu.memory_space<vmem>>, vector<8x128xf32>
    tpu.vector_store %arg12[%c72, %c0_5], %21 {strides = array<i32>} : memref<80x128xf32, #tpu.memory_space<vmem>>, vector<8x128xf32>,
    %c0_6 = arith.constant 0 : index
    %c0_7 = arith.constant 0 : index
    %24 = vector.load %arg2[%c0_6, %c0_7] : memref<64x128xf32, #tpu.memory_space<vmem>>, vector<64x128xf32>
    %c0_8 = arith.constant 0 : index
    %c0_9 = arith.constant 0 : index
    %25 = vector.load %arg1[%c0_8, %c0_9] : memref<64x256xf32, #tpu.memory_space<vmem>>, vector<64x256xf32>
    %c0_10 = arith.constant 0 : index
    %c0_11 = arith.constant 0 : index
    %26 = vector.load %arg3[%c0_10, %c0_11] : memref<256x128xf32, #tpu.memory_space<vmem>>, vector<256x128xf32>
    %cst_12 = arith.constant dense<0.000000e+00> : vector<64x128xf32>
    %27 = tpu.matmul %25, %26, %cst_12 {dimension_numbers = #tpu.dot_dimension_numbers<[1], [0], [0], [1], [0, 0, 1, 1], [], []>} : vector<64x256xf32>, vector<256x128xf32>, vector<64x128xf32> -> vector<64x128xf32>
    %28 = arith.addf %24, %27 : vector<64x128xf32>
    %c0_13 = arith.constant 0 : index
    %c0_14 = arith.constant 0 : index
    %29 = vector.load %arg4[%c0_13, %c0_14] : memref<1x128xf32, #tpu.memory_space<vmem>>, vector<1x128xf32>
    %30 = vector.broadcast %29 : vector<1x128xf32> to vector<64x128xf32>
    %31 = arith.addf %28, %30 : vector<64x128xf32>
    %c8 = arith.constant 8 : index
    %c0_15 = arith.constant 0 : index
    %32 = vector.load %arg12[%c8, %c0_15] : memref<80x128xf32, #tpu.memory_space<vmem>>, vector<64x128xf32>
    tpu.vector_store %arg12[%c8, %c0_15], %31 {strides = array<i32>} : memref<80x128xf32, #tpu.memory_space<vmem>>, vector<64x128xf32>,
    %c7 = arith.constant 7 : index
    %c0_16 = arith.constant 0 : index
    %33 = vector.load %arg12[%c7, %c0_16] : memref<80x128xf32, #tpu.memory_space<vmem>>, vector<64x128xf32>
    %cst_17 = arith.constant 0.000000e+00 : f32
    %34 = vector.shape_cast %18 : vector<64x1xi1> to vector<64x1xi1>
    %35 = vector.broadcast %34 : vector<64x1xi1> to vector<64x128xi1>
    %36 = vector.broadcast %cst_17 : f32 to vector<64x128xf32>
    %37 = arith.select %35, %33, %36 : vector<64x128xi1>, vector<64x128xf32>
    %c9 = arith.constant 9 : index
    %c0_18 = arith.constant 0 : index
    %38 = vector.load %arg12[%c9, %c0_18] : memref<80x128xf32, #tpu.memory_space<vmem>>, vector<64x128xf32>
    %cst_19 = arith.constant 0.000000e+00 : f32
    %39 = vector.shape_cast %20 : vector<64x1xi1> to vector<64x1xi1>
    %40 = vector.broadcast %39 : vector<64x1xi1> to vector<64x128xi1>
    %41 = vector.broadcast %cst_19 : f32 to vector<64x128xf32>
    %42 = arith.select %40, %38, %41 : vector<64x128xi1>, vector<64x128xf32>
    %43 = tpu.concatenate %37, %31, %42 in 1 : vector<64x128xf32>, vector<64x128xf32>, vector<64x128xf32> -> vector<64x384xf32>
    %c0_20 = arith.constant 0 : index
    %c0_21 = arith.constant 0 : index
    %44 = vector.load %arg5[%c0_20, %c0_21] : memref<384x128xf32, #tpu.memory_space<vmem>>, vector<384x128xf32>
    %cst_22 = arith.constant dense<0.000000e+00> : vector<64x128xf32>
    %45 = tpu.matmul %43, %44, %cst_22 {dimension_numbers = #tpu.dot_dimension_numbers<[1], [0], [0], [1], [0, 0, 1, 1], [], []>} : vector<64x384xf32>, vector<384x128xf32>, vector<64x128xf32> -> vector<64x128xf32>
    %c0_23 = arith.constant 0 : index
    %c0_24 = arith.constant 0 : index
    %46 = vector.load %arg7[%c0_23, %c0_24] : memref<1x128xf32, #tpu.memory_space<vmem>>, vector<1x128xf32>
    %c0_25 = arith.constant 0 : index
    %c0_26 = arith.constant 0 : index
    %47 = vector.load %arg8[%c0_25, %c0_26] : memref<1x128xf32, #tpu.memory_space<vmem>>, vector<1x128xf32>
    %cst_27 = arith.constant dense<0.000000e+00> : vector<128xf32>
    %48 = vector.multi_reduction <add>, %45, %cst_27 [0] : vector<64x128xf32> to vector<128xf32>
    %49 = vector.shape_cast %48 : vector<128xf32> to vector<1x128xf32>
    %cst_28 = arith.constant 1.562500e-02 : f32
    %50 = vector.broadcast %cst_28 : f32 to vector<1x128xf32>
    %51 = arith.mulf %49, %50 : vector<1x128xf32>
    %52 = vector.broadcast %51 : vector<1x128xf32> to vector<64x128xf32>
    %53 = arith.subf %45, %52 : vector<64x128xf32>
    %54 = arith.mulf %53, %53 : vector<64x128xf32>
    %cst_29 = arith.constant dense<0.000000e+00> : vector<128xf32>
    %55 = vector.multi_reduction <add>, %54, %cst_29 [0] : vector<64x128xf32> to vector<128xf32>
    %56 = vector.shape_cast %55 : vector<128xf32> to vector<1x128xf32>
    %cst_30 = arith.constant 1.562500e-02 : f32
    %57 = vector.broadcast %cst_30 : f32 to vector<1x128xf32>
    %58 = arith.mulf %56, %57 : vector<1x128xf32>
    %cst_31 = arith.constant 0.000000e+00 : f32
    %59 = vector.broadcast %cst_31 : f32 to vector<1x128xf32>
    %60 = arith.maximumf %58, %59 : vector<1x128xf32>
    %cst_32 = arith.constant 9.99999974E-6 : f32
    %61 = vector.broadcast %cst_32 : f32 to vector<1x128xf32>
    %62 = arith.addf %60, %61 : vector<1x128xf32>
    %63 = math.rsqrt %62 : vector<1x128xf32>
    %64 = arith.mulf %46, %63 : vector<1x128xf32>
    %65 = vector.broadcast %64 : vector<1x128xf32> to vector<64x128xf32>
    %66 = arith.mulf %53, %65 : vector<64x128xf32>
    %67 = vector.broadcast %47 : vector<1x128xf32> to vector<64x128xf32>
    %68 = arith.addf %66, %67 : vector<64x128xf32>
    %cst_33 = arith.constant 0.000000e+00 : f32
    %69 = vector.broadcast %cst_33 : f32 to vector<64x128xf32>
    %70 = arith.maximumf %68, %69 : vector<64x128xf32>
    %c8_34 = arith.constant 8 : index
    %c0_35 = arith.constant 0 : index
    %71 = vector.load %arg12[%c8_34, %c0_35] : memref<80x128xf32, #tpu.memory_space<vmem>>, vector<64x128xf32>
    tpu.vector_store %arg12[%c8_34, %c0_35], %70 {strides = array<i32>} : memref<80x128xf32, #tpu.memory_space<vmem>>, vector<64x128xf32>,
    %c7_36 = arith.constant 7 : index
    %c0_37 = arith.constant 0 : index
    %72 = vector.load %arg12[%c7_36, %c0_37] : memref<80x128xf32, #tpu.memory_space<vmem>>, vector<64x128xf32>
    %cst_38 = arith.constant 0.000000e+00 : f32
    %73 = vector.shape_cast %18 : vector<64x1xi1> to vector<64x1xi1>
    %74 = vector.broadcast %73 : vector<64x1xi1> to vector<64x128xi1>
    %75 = vector.broadcast %cst_38 : f32 to vector<64x128xf32>
    %76 = arith.select %74, %72, %75 : vector<64x128xi1>, vector<64x128xf32>
    %c9_39 = arith.constant 9 : index
    %c0_40 = arith.constant 0 : index
    %77 = vector.load %arg12[%c9_39, %c0_40] : memref<80x128xf32, #tpu.memory_space<vmem>>, vector<64x128xf32>
    %cst_41 = arith.constant 0.000000e+00 : f32
    %78 = vector.shape_cast %20 : vector<64x1xi1> to vector<64x1xi1>
    %79 = vector.broadcast %78 : vector<64x1xi1> to vector<64x128xi1>
    %80 = vector.broadcast %cst_41 : f32 to vector<64x128xf32>
    %81 = arith.select %79, %77, %80 : vector<64x128xi1>, vector<64x128xf32>
    %82 = tpu.concatenate %76, %70, %81 in 1 : vector<64x128xf32>, vector<64x128xf32>, vector<64x128xf32> -> vector<64x384xf32>
    %c0_42 = arith.constant 0 : index
    %c0_43 = arith.constant 0 : index
    %83 = vector.load %arg6[%c0_42, %c0_43] : memref<384x128xf32, #tpu.memory_space<vmem>>, vector<384x128xf32>
    %cst_44 = arith.constant dense<0.000000e+00> : vector<64x128xf32>
    %84 = tpu.matmul %82, %83, %cst_44 {dimension_numbers = #tpu.dot_dimension_numbers<[1], [0], [0], [1], [0, 0, 1, 1], [], []>} : vector<64x384xf32>, vector<384x128xf32>, vector<64x128xf32> -> vector<64x128xf32>
    %c0_45 = arith.constant 0 : index
    %c0_46 = arith.constant 0 : index
    %85 = vector.load %arg9[%c0_45, %c0_46] : memref<1x128xf32, #tpu.memory_space<vmem>>, vector<1x128xf32>
    %c0_47 = arith.constant 0 : index
    %c0_48 = arith.constant 0 : index
    %86 = vector.load %arg10[%c0_47, %c0_48] : memref<1x128xf32, #tpu.memory_space<vmem>>, vector<1x128xf32>
    %cst_49 = arith.constant dense<0.000000e+00> : vector<128xf32>
    %87 = vector.multi_reduction <add>, %84, %cst_49 [0] : vector<64x128xf32> to vector<128xf32>
    %88 = vector.shape_cast %87 : vector<128xf32> to vector<1x128xf32>
    %cst_50 = arith.constant 1.562500e-02 : f32
    %89 = vector.broadcast %cst_50 : f32 to vector<1x128xf32>
    %90 = arith.mulf %88, %89 : vector<1x128xf32>
    %91 = vector.broadcast %90 : vector<1x128xf32> to vector<64x128xf32>
    %92 = arith.subf %84, %91 : vector<64x128xf32>
    %93 = arith.mulf %92, %92 : vector<64x128xf32>
    %cst_51 = arith.constant dense<0.000000e+00> : vector<128xf32>
    %94 = vector.multi_reduction <add>, %93, %cst_51 [0] : vector<64x128xf32> to vector<128xf32>
    %95 = vector.shape_cast %94 : vector<128xf32> to vector<1x128xf32>
    %cst_52 = arith.constant 1.562500e-02 : f32
    %96 = vector.broadcast %cst_52 : f32 to vector<1x128xf32>
    %97 = arith.mulf %95, %96 : vector<1x128xf32>
    %cst_53 = arith.constant 0.000000e+00 : f32
    %98 = vector.broadcast %cst_53 : f32 to vector<1x128xf32>
    %99 = arith.maximumf %97, %98 : vector<1x128xf32>
    %cst_54 = arith.constant 9.99999974E-6 : f32
    %100 = vector.broadcast %cst_54 : f32 to vector<1x128xf32>
    %101 = arith.addf %99, %100 : vector<1x128xf32>
    %102 = math.rsqrt %101 : vector<1x128xf32>
    %103 = arith.mulf %85, %102 : vector<1x128xf32>
    %104 = vector.broadcast %103 : vector<1x128xf32> to vector<64x128xf32>
    %105 = arith.mulf %92, %104 : vector<64x128xf32>
    %106 = vector.broadcast %86 : vector<1x128xf32> to vector<64x128xf32>
    %107 = arith.addf %105, %106 : vector<64x128xf32>
    %cst_55 = arith.constant 0.000000e+00 : f32
    %108 = vector.broadcast %cst_55 : f32 to vector<64x128xf32>
    %109 = arith.maximumf %107, %108 : vector<64x128xf32>
    %c0_56 = arith.constant 0 : index
    %c0_57 = arith.constant 0 : index
    %110 = vector.load %arg11[%c0_56, %c0_57] : memref<64x128xf32, #tpu.memory_space<vmem>>, vector<64x128xf32>
    tpu.vector_store %arg11[%c0_56, %c0_57], %109 {strides = array<i32>} : memref<64x128xf32, #tpu.memory_space<vmem>>, vector<64x128xf32>,
    return
  }
  func.func @transform_0(%arg0: i32) -> (i32, i32) {
    %c0_i32 = arith.constant 0 : i32
    %c0_i32_0 = arith.constant 0 : i32
    %c0_i32_1 = arith.constant 0 : i32
    return %c0_i32, %c0_i32_0 : i32, i32
  }
  func.func @transform_1(%arg0: i32) -> (i32, i32) {
    %c0_i32 = arith.constant 0 : i32
    %c0_i32_0 = arith.constant 0 : i32
    %c0_i32_1 = arith.constant 0 : i32
    return %c0_i32, %c0_i32_0 : i32, i32
  }
  func.func @transform_2(%arg0: i32) -> (i32, i32) {
    %c0_i32 = arith.constant 0 : i32
    %c0_i32_0 = arith.constant 0 : i32
    %c0_i32_1 = arith.constant 0 : i32
    return %c0_i32, %c0_i32_0 : i32, i32
  }
  func.func @transform_3(%arg0: i32) -> (i32, i32) {
    %c0_i32 = arith.constant 0 : i32
    %c0_i32_0 = arith.constant 0 : i32
    %c0_i32_1 = arith.constant 0 : i32
    return %c0_i32, %c0_i32_0 : i32, i32
  }
  func.func @transform_4(%arg0: i32) -> (i32, i32) {
    %c0_i32 = arith.constant 0 : i32
    %c0_i32_0 = arith.constant 0 : i32
    %c0_i32_1 = arith.constant 0 : i32
    return %c0_i32, %c0_i32_0 : i32, i32
  }
  func.func @transform_5(%arg0: i32) -> (i32, i32) {
    %c0_i32 = arith.constant 0 : i32
    %c0_i32_0 = arith.constant 0 : i32
    %c0_i32_1 = arith.constant 0 : i32
    return %c0_i32, %c0_i32_0 : i32, i32
  }
  func.func @transform_6(%arg0: i32) -> (i32, i32) {
    %c0_i32 = arith.constant 0 : i32
    %c0_i32_0 = arith.constant 0 : i32
    %c0_i32_1 = arith.constant 0 : i32
    return %c0_i32, %c0_i32_0 : i32, i32
  }
  func.func @transform_7(%arg0: i32) -> (i32, i32) {
    %c0_i32 = arith.constant 0 : i32
    %c0_i32_0 = arith.constant 0 : i32
    %c0_i32_1 = arith.constant 0 : i32
    return %c0_i32, %c0_i32_0 : i32, i32
  }
  func.func @transform_8(%arg0: i32) -> (i32, i32) {
    %c0_i32 = arith.constant 0 : i32
    %c0_i32_0 = arith.constant 0 : i32
    %c0_i32_1 = arith.constant 0 : i32
    return %c0_i32, %c0_i32_0 : i32, i32
  }
  func.func @transform_9(%arg0: i32) -> (i32, i32) {
    %c0_i32 = arith.constant 0 : i32
    %c0_i32_0 = arith.constant 0 : i32
    %c0_i32_1 = arith.constant 0 : i32
    return %c0_i32, %c0_i32_0 : i32, i32
  }
  func.func @transform_10(%arg0: i32) -> (i32, i32) {
    %c0_i32 = arith.constant 0 : i32
    %c0_i32_0 = arith.constant 0 : i32
    %c0_i32_1 = arith.constant 0 : i32
    return %c0_i32, %c0_i32_0 : i32, i32
  }
}

</mosaic_0001>

<llo_original>
// kernel: up_block_1d.1
$region0: #{up_block_1d.1}
  #allocation0 [shape = 'u32[]', space=smem, size = 0x4, offset = 0x4, fixed_abs, tag = 'smem constant byte address 0x4 - core index']
  #allocation1 [shape = 'u32[144,128]{1,0:T(1,128)}', space=vmem, size = 0x12000, scoped, tag = 'internal scratch']
  #allocation2 [shape = 'f32[80,128]{1,0:T(8,128)}', space=vmem, size = 0xa000, scoped, tag = 'scratch operand']
  %s0 = inlined_call_operand.vmem [shape: f32[64,256], index: 0, kind: input, shape index: {}]
  %s1 = inlined_call_operand.vmem [shape: f32[64,128], index: 1, kind: input, shape index: {}]
  %s2 = inlined_call_operand.vmem [shape: f32[256,128], index: 2, kind: input, shape index: {}]
  %s3 = inlined_call_operand.vmem [shape: f32[1,128], index: 3, kind: input, shape index: {}]
  %s4 = inlined_call_operand.vmem [shape: f32[384,128], index: 4, kind: input, shape index: {}]
  %s5 = inlined_call_operand.vmem [shape: f32[384,128], index: 5, kind: input, shape index: {}]
  %s6 = inlined_call_operand.vmem [shape: f32[1,128], index: 6, kind: input, shape index: {}]
  %s7 = inlined_call_operand.vmem [shape: f32[1,128], index: 7, kind: input, shape index: {}]
  %s8 = inlined_call_operand.vmem [shape: f32[1,128], index: 8, kind: input, shape index: {}]
  %s9 = inlined_call_operand.vmem [shape: f32[1,128], index: 9, kind: input, shape index: {}]
  %s10 = inlined_call_operand.vmem [shape: f32[64,128], index: 10, kind: output, shape index: {}]
  %s11 = sld [smem:[#allocation0]]
  $region50: #{up_block_1d.1} parent=0
    _
  %s13 = ssub.s32 1, %s11
  %s14 = scalar_select 0, %s13, %s11
  // Predicated region
  $region2: #{up_block_1d.1} parent=0 // pred_check
    _
  $region3: #{up_block_1d.1} parent=0 // pred_check_branch
    %16 = sbr.rel (0) target = $region5
  $region4: #{up_block_1d.1} parent=0 // pred_region
    _
  $region5: #{up_block_1d.1} parent=0 // pred_fallthru
    _
  // Predicated region
  $region6: #{up_block_1d.1} parent=0 // pred_check
    _
  $region7: #{up_block_1d.1} parent=0 // pred_check_branch
    %18 = sbr.rel (0) target = $region9
  $region8: #{up_block_1d.1} parent=0 // pred_region
    _
  $region9: #{up_block_1d.1} parent=0 // pred_fallthru
    _
  // Predicated region
  $region10: #{up_block_1d.1} parent=0 // pred_check
    _
  $region11: #{up_block_1d.1} parent=0 // pred_check_branch
    %20 = sbr.rel (0) target = $region13
  $region12: #{up_block_1d.1} parent=0 // pred_region
    _
  $region13: #{up_block_1d.1} parent=0 // pred_fallthru
    _
  // Predicated region
  $region14: #{up_block_1d.1} parent=0 // pred_check
    _
  $region15: #{up_block_1d.1} parent=0 // pred_check_branch
    %22 = sbr.rel (0) target = $region17
  $region16: #{up_block_1d.1} parent=0 // pred_region
    _
  $region17: #{up_block_1d.1} parent=0 // pred_fallthru
    _
  // Predicated region
  $region18: #{up_block_1d.1} parent=0 // pred_check
    _
  $region19: #{up_block_1d.1} parent=0 // pred_check_branch
    %24 = sbr.rel (0) target = $region21
  $region20: #{up_block_1d.1} parent=0 // pred_region
    _
  $region21: #{up_block_1d.1} parent=0 // pred_fallthru
    _
  // Predicated region
  $region22: #{up_block_1d.1} parent=0 // pred_check
    _
  $region23: #{up_block_1d.1} parent=0 // pred_check_branch
    %26 = sbr.rel (0) target = $region25
  $region24: #{up_block_1d.1} parent=0 // pred_region
    _
  $region25: #{up_block_1d.1} parent=0 // pred_fallthru
    _
  // Predicated region
  $region26: #{up_block_1d.1} parent=0 // pred_check
    _
  $region27: #{up_block_1d.1} parent=0 // pred_check_branch
    %28 = sbr.rel (0) target = $region29
  $region28: #{up_block_1d.1} parent=0 // pred_region
    _
  $region29: #{up_block_1d.1} parent=0 // pred_fallthru
    _
  // Predicated region
  $region30: #{up_block_1d.1} parent=0 // pred_check
    _
  $region31: #{up_block_1d.1} parent=0 // pred_check_branch
    %30 = sbr.rel (0) target = $region33
  $region32: #{up_block_1d.1} parent=0 // pred_region
    _
  $region33: #{up_block_1d.1} parent=0 // pred_fallthru
    _
  // Predicated region
  $region34: #{up_block_1d.1} parent=0 // pred_check
    _
  $region35: #{up_block_1d.1} parent=0 // pred_check_branch
    %32 = sbr.rel (0) target = $region37
  $region36: #{up_block_1d.1} parent=0 // pred_region
    _
  $region37: #{up_block_1d.1} parent=0 // pred_fallthru
    _
  // Predicated region
  $region38: #{up_block_1d.1} parent=0 // pred_check
    _
  $region39: #{up_block_1d.1} parent=0 // pred_check_branch
    %34 = sbr.rel (0) target = $region41
  $region40: #{up_block_1d.1} parent=0 // pred_region
    _
  $region41: #{up_block_1d.1} parent=0 // pred_fallthru
    _
  %v35 = vlaneseq
  %v36 = vshrl.u32 %v35, 7
  %v37 = vadd.s32 %v36, 8
  %v38 = vadd.s32 %v36, 16
  %v39 = vadd.s32 %v36, 24
  %v40 = vadd.s32 %v36, 32
  %v41 = vadd.s32 %v36, 40
  %v42 = vadd.s32 %v36, 48
  %v43 = vadd.s32 %v36, 56
  %vm44 = vcmp.lt.s32.totalorder %v36, 0
  %v45 = vsub.s32 0, %v36
  %v46 = vsel %vm44, %v45, %v36
  %v47 = vshrl.u32 %v46, 5
  %v48 = vand.u32 %v46, 31
  %v49 = vsub.s32 0, %v48
  %v50 = vsel %vm44, %v49, %v48
  %vm51 = vcmp.lt.s32.totalorder %v37, 0
  %v52 = vsub.s32 0, %v37
  %v53 = vsel %vm51, %v52, %v37
  %v54 = vshrl.u32 %v53, 5
  %v55 = vand.u32 %v53, 31
  %v56 = vsub.s32 0, %v55
  %v57 = vsel %vm51, %v56, %v55
  %vm58 = vcmp.lt.s32.totalorder %v38, 0
  %v59 = vsub.s32 0, %v38
  %v60 = vsel %vm58, %v59, %v38
  %v61 = vshrl.u32 %v60, 5
  %v62 = vand.u32 %v60, 31
  %v63 = vsub.s32 0, %v62
  %v64 = vsel %vm58, %v63, %v62
  %vm65 = vcmp.lt.s32.totalorder %v39, 0
  %v66 = vsub.s32 0, %v39
  %v67 = vsel %vm65, %v66, %v39
  %v68 = vshrl.u32 %v67, 5
  %v69 = vand.u32 %v67, 31
  %v70 = vsub.s32 0, %v69
  %v71 = vsel %vm65, %v70, %v69
  %vm72 = vcmp.lt.s32.totalorder %v40, 0
  %v73 = vsub.s32 0, %v40
  %v74 = vsel %vm72, %v73, %v40
  %v75 = vshrl.u32 %v74, 5
  %v76 = vand.u32 %v74, 31
  %v77 = vsub.s32 0, %v76
  %v78 = vsel %vm72, %v77, %v76
  %vm79 = vcmp.lt.s32.totalorder %v41, 0
  %v80 = vsub.s32 0, %v41
  %v81 = vsel %vm79, %v80, %v41
  %v82 = vshrl.u32 %v81, 5
  %v83 = vand.u32 %v81, 31
  %v84 = vsub.s32 0, %v83
  %v85 = vsel %vm79, %v84, %v83
  %vm86 = vcmp.lt.s32.totalorder %v42, 0
  %v87 = vsub.s32 0, %v42
  %v88 = vsel %vm86, %v87, %v42
  %v89 = vshrl.u32 %v88, 5
  %v90 = vand.u32 %v88, 31
  %v91 = vsub.s32 0, %v90
  %v92 = vsel %vm86, %v91, %v90
  %vm93 = vcmp.lt.s32.totalorder %v43, 0
  %v94 = vsub.s32 0, %v43
  %v95 = vsel %vm93, %v94, %v43
  %v96 = vshrl.u32 %v95, 5
  %v97 = vand.u32 %v95, 31
  %v98 = vsub.s32 0, %v97
  %v99 = vsel %vm93, %v98, %v97
  %vm100 = vcmp.ne.s32.totalorder %v50, 0
  %vm101 = vcmp.ne.s32.totalorder %v57, 0
  %vm102 = vcmp.ne.s32.totalorder %v64, 0
  %vm103 = vcmp.ne.s32.totalorder %v71, 0
  %vm104 = vcmp.ne.s32.totalorder %v78, 0
  %vm105 = vcmp.ne.s32.totalorder %v85, 0
  %vm106 = vcmp.ne.s32.totalorder %v92, 0
  %vm107 = vcmp.ne.s32.totalorder %v99, 0
  %vm108 = vcmp.lt.s32.totalorder %v50, 0
  %vm109 = vcmp.lt.s32.totalorder %v57, 0
  %vm110 = vcmp.lt.s32.totalorder %v64, 0
  %vm111 = vcmp.lt.s32.totalorder %v71, 0
  %vm112 = vcmp.lt.s32.totalorder %v78, 0
  %vm113 = vcmp.lt.s32.totalorder %v85, 0
  %vm114 = vcmp.lt.s32.totalorder %v92, 0
  %vm115 = vcmp.lt.s32.totalorder %v99, 0
  %vm116 = vmand %vm108, %vm100
  %vm117 = vmand %vm109, %vm101
  %vm118 = vmand %vm110, %vm102
  %vm119 = vmand %vm111, %vm103
  %vm120 = vmand %vm112, %vm104
  %vm121 = vmand %vm113, %vm105
  %vm122 = vmand %vm114, %vm106
  %vm123 = vmand %vm115, %vm107
  %v124 = vadd.s32 %v50, 32
  %v125 = vadd.s32 %v57, 32
  %v126 = vadd.s32 %v64, 32
  %v127 = vadd.s32 %v71, 32
  %v128 = vadd.s32 %v78, 32
  %v129 = vadd.s32 %v85, 32
  %v130 = vadd.s32 %v92, 32
  %v131 = vadd.s32 %v99, 32
  %v132 = vsel %vm116, %v124, %v50
  %v133 = vsel %vm117, %v125, %v57
  %v134 = vsel %vm118, %v126, %v64
  %v135 = vsel %vm119, %v127, %v71
  %v136 = vsel %vm120, %v128, %v78
  %v137 = vsel %vm121, %v129, %v85
  %v138 = vsel %vm122, %v130, %v92
  %v139 = vsel %vm123, %v131, %v99
  %vm140 = vcmp.ne.s32.totalorder %v132, 0
  %vm141 = vcmp.ne.s32.totalorder %v133, 0
  %vm142 = vcmp.ne.s32.totalorder %v134, 0
  %vm143 = vcmp.ne.s32.totalorder %v135, 0
  %vm144 = vcmp.ne.s32.totalorder %v136, 0
  %vm145 = vcmp.ne.s32.totalorder %v137, 0
  %vm146 = vcmp.ne.s32.totalorder %v138, 0
  %vm147 = vcmp.ne.s32.totalorder %v139, 0
  %vm148 = vcmp.ne.s32.totalorder %v132, 31
  %vm149 = vcmp.ne.s32.totalorder %v133, 31
  %vm150 = vcmp.ne.s32.totalorder %v134, 31
  %vm151 = vcmp.ne.s32.totalorder %v135, 31
  %vm152 = vcmp.ne.s32.totalorder %v136, 31
  %vm153 = vcmp.ne.s32.totalorder %v137, 31
  %vm154 = vcmp.ne.s32.totalorder %v138, 31
  %vm155 = vcmp.ne.s32.totalorder %v139, 31
  %156 = vst [vmem:[#allocation2] sm:$0xff] 0.0
  %157 = vst [vmem:[#allocation2 + $0x48] sm:$0xff] 0.0
  %v158 = vld [vmem:[%s1] sm:$0xff]
  %v159 = vld [vmem:[%s1 + $0x8] sm:$0xff]
  %v160 = vld [vmem:[%s1 + $0x10] sm:$0xff]
  %v161 = vld [vmem:[%s1 + $0x18] sm:$0xff]
  %v162 = vld [vmem:[%s1 + $0x20] sm:$0xff]
  %v163 = vld [vmem:[%s1 + $0x28] sm:$0xff]
  %v164 = vld [vmem:[%s1 + $0x30] sm:$0xff]
  %v165 = vld [vmem:[%s1 + $0x38] sm:$0xff]
  %v166 = vld [vmem:[%s0] sm:$0xff]
  %v167 = vld [vmem:[%s0 + $0x8] sm:$0xff]
  %v168 = vld [vmem:[%s0 + $0x10] sm:$0xff]
  %v169 = vld [vmem:[%s0 + $0x18] sm:$0xff]
  %v170 = vld [vmem:[%s0 + $0x20] sm:$0xff]
  %v171 = vld [vmem:[%s0 + $0x28] sm:$0xff]
  %v172 = vld [vmem:[%s0 + $0x30] sm:$0xff]
  %v173 = vld [vmem:[%s0 + $0x38] sm:$0xff]
  %v174 = vld [vmem:[%s0 + $0x40] sm:$0xff]
  %v175 = vld [vmem:[%s0 + $0x48] sm:$0xff]
  %v176 = vld [vmem:[%s0 + $0x50] sm:$0xff]
  %v177 = vld [vmem:[%s0 + $0x58] sm:$0xff]
  %v178 = vld [vmem:[%s0 + $0x60] sm:$0xff]
  %v179 = vld [vmem:[%s0 + $0x68] sm:$0xff]
  %v180 = vld [vmem:[%s0 + $0x70] sm:$0xff]
  %v181 = vld [vmem:[%s0 + $0x78] sm:$0xff]
  %v182 = vld [vmem:[%s2] sm:$0xff]
  %v183 = vld [vmem:[%s2 + $0x8] sm:$0xff]
  %v184 = vld [vmem:[%s2 + $0x10] sm:$0xff]
  %v185 = vld [vmem:[%s2 + $0x18] sm:$0xff]
  %v186 = vld [vmem:[%s2 + $0x20] sm:$0xff]
  %v187 = vld [vmem:[%s2 + $0x28] sm:$0xff]
  %v188 = vld [vmem:[%s2 + $0x30] sm:$0xff]
  %v189 = vld [vmem:[%s2 + $0x38] sm:$0xff]
  %v190 = vld [vmem:[%s2 + $0x40] sm:$0xff]
  %v191 = vld [vmem:[%s2 + $0x48] sm:$0xff]
  %v192 = vld [vmem:[%s2 + $0x50] sm:$0xff]
  %v193 = vld [vmem:[%s2 + $0x58] sm:$0xff]
  %v194 = vld [vmem:[%s2 + $0x60] sm:$0xff]
  %v195 = vld [vmem:[%s2 + $0x68] sm:$0xff]
  %v196 = vld [vmem:[%s2 + $0x70] sm:$0xff]
  %v197 = vld [vmem:[%s2 + $0x78] sm:$0xff]
  %v198 = vld [vmem:[%s2 + $0x80] sm:$0xff]
  %v199 = vld [vmem:[%s2 + $0x88] sm:$0xff]
  %v200 = vld [vmem:[%s2 + $0x90] sm:$0xff]
  %v201 = vld [vmem:[%s2 + $0x98] sm:$0xff]
  %v202 = vld [vmem:[%s2 + $0xa0] sm:$0xff]
  %v203 = vld [vmem:[%s2 + $0xa8] sm:$0xff]
  %v204 = vld [vmem:[%s2 + $0xb0] sm:$0xff]
  %v205 = vld [vmem:[%s2 + $0xb8] sm:$0xff]
  %v206 = vld [vmem:[%s2 + $0xc0] sm:$0xff]
  %v207 = vld [vmem:[%s2 + $0xc8] sm:$0xff]
  %v208 = vld [vmem:[%s2 + $0xd0] sm:$0xff]
  %v209 = vld [vmem:[%s2 + $0xd8] sm:$0xff]
  %v210 = vld [vmem:[%s2 + $0xe0] sm:$0xff]
  %v211 = vld [vmem:[%s2 + $0xe8] sm:$0xff]
  %v212 = vld [vmem:[%s2 + $0xf0] sm:$0xff]
  %v213 = vld [vmem:[%s2 + $0xf8] sm:$0xff]
  %214 = vmatprep.subr.mxu0 0.0
  %215 = vmatpush1.msra.mxu0 %v182
  %216 = vmatprep.subr.mxu0 0.0
  %217 = vmatpush1.msra.mxu0 %v183
  %218 = vmatprep.subr.mxu0 0.0
  %219 = vmatpush1.msra.mxu0 %v184
  %220 = vmatprep.subr.mxu0 0.0
  %221 = vmatpush1.msra.mxu0 %v185
  %222 = vmatprep.subr.mxu0 0.0
  %223 = vmatpush1.msra.mxu0 %v186
  %224 = vmatprep.subr.mxu0 0.0
  %225 = vmatpush1.msra.mxu0 %v187
  %226 = vmatprep.subr.mxu0 0.0
  %227 = vmatpush1.msra.mxu0 %v188
  %228 = vmatprep.subr.mxu0 0.0
  %229 = vmatpush1.msra.mxu0 %v189
  %230 = vmatprep.subr.mxu0 0.0
  %231 = vmatpush1.msra.mxu0 %v190
  %232 = vmatprep.subr.mxu0 0.0
  %233 = vmatpush1.msra.mxu0 %v191
  %234 = vmatprep.subr.mxu0 0.0
  %235 = vmatpush1.msra.mxu0 %v192
  %236 = vmatprep.subr.mxu0 0.0
  %237 = vmatpush1.msra.mxu0 %v193
  %238 = vmatprep.subr.mxu0 0.0
  %239 = vmatpush1.msra.mxu0 %v194
  %240 = vmatprep.subr.mxu0 0.0
  %241 = vmatpush1.msra.mxu0 %v195
  %242 = vmatprep.subr.mxu0 0.0
  %243 = vmatpush1.msra.mxu0 %v196
  %244 = vmatprep.subr.mxu0 0.0
  %245 = vmatpush1.msra.mxu0 %v197
  %246 = vmatprep.subr.mxu0 0.0
  %247 = vmatpush1.msra.mxu0 %v198
  %248 = vmatprep.subr.mxu0 0.0
  %249 = vmatpush1.msra.mxu0 %v199
  %250 = vmatprep.subr.mxu0 0.0
  %251 = vmatpush1.msra.mxu0 %v200
  %252 = vmatprep.subr.mxu0 0.0
  %253 = vmatpush1.msra.mxu0 %v201
  %254 = vmatprep.subr.mxu0 0.0
  %255 = vmatpush1.msra.mxu0 %v202
  %256 = vmatprep.subr.mxu0 0.0
  %257 = vmatpush1.msra.mxu0 %v203
  %258 = vmatprep.subr.mxu0 0.0
  %259 = vmatpush1.msra.mxu0 %v204
  %260 = vmatprep.subr.mxu0 0.0
  %261 = vmatpush1.msra.mxu0 %v205
  %262 = vmatprep.subr.mxu0 0.0
  %263 = vmatpush1.msra.mxu0 %v206
  %264 = vmatprep.subr.mxu0 0.0
  %265 = vmatpush1.msra.mxu0 %v207
  %266 = vmatprep.subr.mxu0 0.0
  %267 = vmatpush1.msra.mxu0 %v208
  %268 = vmatprep.subr.mxu0 0.0
  %269 = vmatpush1.msra.mxu0 %v209
  %270 = vmatprep.subr.mxu0 0.0
  %271 = vmatpush1.msra.mxu0 %v210
  %272 = vmatprep.subr.mxu0 0.0
  %273 = vmatpush1.msra.mxu0 %v211
  %274 = vmatprep.subr.mxu0 0.0
  %275 = vmatpush1.msra.mxu0 %v212
  %276 = vmatprep.subr.mxu0 0.0
  %277 = vmatpush1.msra.mxu0 %v213
  %278 = vmatprep.mubr.f32.mxu0 %v167
  %279 = vmatmul.mubr.f32.gmra.mrb[0].mxu0 %v166
  %v280 = vpop.f32.mrb[0].mxu0
  %v281 = vadd.f32 0.0, %v280
  %v282 = vpop.f32.mrb[0].mxu0
  %283 = vmatprep.mubr.f32.mxu0 %v169
  %284 = vmatmul.mubr.f32.gmra.mrb[0].mxu0 %v168
  %v285 = vpop.f32.mrb[0].mxu0
  %v286 = vadd.f32 0.0, %v285
  %v287 = vpop.f32.mrb[0].mxu0
  %288 = vmatprep.mubr.f32.mxu0 %v171
  %289 = vmatmul.mubr.f32.gmra.mrb[0].mxu0 %v170
  %v290 = vpop.f32.mrb[0].mxu0
  %v291 = vadd.f32 0.0, %v290
  %v292 = vpop.f32.mrb[0].mxu0
  %293 = vmatprep.mubr.f32.mxu0 %v173
  %294 = vmatmul.mubr.f32.gmra.mrb[0].mxu0 %v172
  %v295 = vpop.f32.mrb[0].mxu0
  %v296 = vadd.f32 0.0, %v295
  %v297 = vpop.f32.mrb[0].mxu0
  %298 = vmatprep.mubr.f32.mxu0 %v175
  %299 = vmatmul.mubr.f32.gmra.mrb[0].mxu0 %v174
  %v300 = vpop.f32.mrb[0].mxu0
  %v301 = vadd.f32 0.0, %v300
  %v302 = vpop.f32.mrb[0].mxu0
  %303 = vmatprep.mubr.f32.mxu0 %v177
  %304 = vmatmul.mubr.f32.gmra.mrb[0].mxu0 %v176
  %v305 = vpop.f32.mrb[0].mxu0
  %v306 = vadd.f32 0.0, %v305
  %v307 = vpop.f32.mrb[0].mxu0
  %308 = vmatprep.mubr.f32.mxu0 %v179
  %309 = vmatmul.mubr.f32.gmra.mrb[0].mxu0 %v178
  %v310 = vpop.f32.mrb[0].mxu0
  %v311 = vadd.f32 0.0, %v310
  %v312 = vpop.f32.mrb[0].mxu0
  %313 = vmatprep.mubr.f32.mxu0 %v181
  %314 = vmatmul.mubr.f32.gmra.mrb[0].mxu0 %v180
  %v315 = vpop.f32.mrb[0].mxu0
  %v316 = vadd.f32 0.0, %v315
  %v317 = vpop.f32.mrb[0].mxu0
  %318 = vdwg.mxu0
  %v319 = vadd.f32 %v158, %v281
  %v320 = vadd.f32 %v159, %v286
  %v321 = vadd.f32 %v160, %v291
  %v322 = vadd.f32 %v161, %v296
  %v323 = vadd.f32 %v162, %v301
  %v324 = vadd.f32 %v163, %v306
  %v325 = vadd.f32 %v164, %v311
  %v326 = vadd.f32 %v165, %v316
  %v327 = vld [vmem:[%s3] sm:$0x1]
  %v329 = vlaneseq
  %v330 = vshrl.u32 %v329, 7
  %v331 = vsub.s32 0, %v330
  %v332 = vrot.slane %v327, %v331
  %v334 = vadd.f32 %v319, %v332
  %v335 = vadd.f32 %v320, %v332
  %v336 = vadd.f32 %v321, %v332
  %v337 = vadd.f32 %v322, %v332
  %v338 = vadd.f32 %v323, %v332
  %v339 = vadd.f32 %v324, %v332
  %v340 = vadd.f32 %v325, %v332
  %v341 = vadd.f32 %v326, %v332
  %342 = vst [vmem:[#allocation2 + $0x8] sm:$0xff] %v334
  %343 = vst [vmem:[#allocation2 + $0x10] sm:$0xff] %v335
  %344 = vst [vmem:[#allocation2 + $0x18] sm:$0xff] %v336
  %345 = vst [vmem:[#allocation2 + $0x20] sm:$0xff] %v337
  %346 = vst [vmem:[#allocation2 + $0x28] sm:$0xff] %v338
  %347 = vst [vmem:[#allocation2 + $0x30] sm:$0xff] %v339
  %348 = vst [vmem:[#allocation2 + $0x38] sm:$0xff] %v340
  %349 = vst [vmem:[#allocation2 + $0x40] sm:$0xff] %v341
  %v350 = vld [vmem:[#allocation2 + $0x7] sm:$0xff]
  %v351 = vld [vmem:[#allocation2 + $0xf] sm:$0xff]
  %v352 = vld [vmem:[#allocation2 + $0x17] sm:$0xff]
  %v353 = vld [vmem:[#allocation2 + $0x1f] sm:$0xff]
  %v354 = vld [vmem:[#allocation2 + $0x27] sm:$0xff]
  %v355 = vld [vmem:[#allocation2 + $0x2f] sm:$0xff]
  %v356 = vld [vmem:[#allocation2 + $0x37] sm:$0xff]
  %v357 = vld [vmem:[#allocation2 + $0x3f] sm:$0xff]
  %v358 = vsel %vm140, 1, 0
  %v359 = vsel %vm141, 1, 0
  %v360 = vsel %vm142, 1, 0
  %v361 = vsel %vm143, 1, 0
  %v362 = vsel %vm144, 1, 0
  %v363 = vsel %vm145, 1, 0
  %v364 = vsel %vm146, 1, 0
  %v365 = vsel %vm147, 1, 0
  %vm366 = vcmp.eq.s32.totalorder %v358, 1
  %vm367 = vcmp.eq.s32.totalorder %v359, 1
  %vm368 = vcmp.eq.s32.totalorder %v360, 1
  %vm369 = vcmp.eq.s32.totalorder %v361, 1
  %vm370 = vcmp.eq.s32.totalorder %v362, 1
  %vm371 = vcmp.eq.s32.totalorder %v363, 1
  %vm372 = vcmp.eq.s32.totalorder %v364, 1
  %vm373 = vcmp.eq.s32.totalorder %v365, 1
  %v374 = vsel %vm366, %v350, 0.0
  %v375 = vsel %vm367, %v351, 0.0
  %v376 = vsel %vm368, %v352, 0.0
  %v377 = vsel %vm369, %v353, 0.0
  %v378 = vsel %vm370, %v354, 0.0
  %v379 = vsel %vm371, %v355, 0.0
  %v380 = vsel %vm372, %v356, 0.0
  %v381 = vsel %vm373, %v357, 0.0
  %v382 = vld [vmem:[#allocation2 + $0x9] sm:$0xff]
  %v383 = vld [vmem:[#allocation2 + $0x11] sm:$0xff]
  %v384 = vld [vmem:[#allocation2 + $0x19] sm:$0xff]
  %v385 = vld [vmem:[#allocation2 + $0x21] sm:$0xff]
  %v386 = vld [vmem:[#allocation2 + $0x29] sm:$0xff]
  %v387 = vld [vmem:[#allocation2 + $0x31] sm:$0xff]
  %v388 = vld [vmem:[#allocation2 + $0x39] sm:$0xff]
  %v389 = vld [vmem:[#allocation2 + $0x41] sm:$0xff]
  %v390 = vsel %vm148, 1, 0
  %v391 = vsel %vm149, 1, 0
  %v392 = vsel %vm150, 1, 0
  %v393 = vsel %vm151, 1, 0
  %v394 = vsel %vm152, 1, 0
  %v395 = vsel %vm153, 1, 0
  %v396 = vsel %vm154, 1, 0
  %v397 = vsel %vm155, 1, 0
  %vm398 = vcmp.eq.s32.totalorder %v390, 1
  %vm399 = vcmp.eq.s32.totalorder %v391, 1
  %vm400 = vcmp.eq.s32.totalorder %v392, 1
  %vm401 = vcmp.eq.s32.totalorder %v393, 1
  %vm402 = vcmp.eq.s32.totalorder %v394, 1
  %vm403 = vcmp.eq.s32.totalorder %v395, 1
  %vm404 = vcmp.eq.s32.totalorder %v396, 1
  %vm405 = vcmp.eq.s32.totalorder %v397, 1
  %v406 = vsel %vm398, %v382, 0.0
  %v407 = vsel %vm399, %v383, 0.0
  %v408 = vsel %vm400, %v384, 0.0
  %v409 = vsel %vm401, %v385, 0.0
  %v410 = vsel %vm402, %v386, 0.0
  %v411 = vsel %vm403, %v387, 0.0
  %v412 = vsel %vm404, %v388, 0.0
  %v413 = vsel %vm405, %v389, 0.0
  %v414 = vld [vmem:[%s4] sm:$0xff]
  %v415 = vld [vmem:[%s4 + $0x8] sm:$0xff]
  %v416 = vld [vmem:[%s4 + $0x10] sm:$0xff]
  %v417 = vld [vmem:[%s4 + $0x18] sm:$0xff]
  %v418 = vld [vmem:[%s4 + $0x20] sm:$0xff]
  %v419 = vld [vmem:[%s4 + $0x28] sm:$0xff]
  %v420 = vld [vmem:[%s4 + $0x30] sm:$0xff]
  %v421 = vld [vmem:[%s4 + $0x38] sm:$0xff]
  %v422 = vld [vmem:[%s4 + $0x40] sm:$0xff]
  %v423 = vld [vmem:[%s4 + $0x48] sm:$0xff]
  %v424 = vld [vmem:[%s4 + $0x50] sm:$0xff]
  %v425 = vld [vmem:[%s4 + $0x58] sm:$0xff]
  %v426 = vld [vmem:[%s4 + $0x60] sm:$0xff]
  %v427 = vld [vmem:[%s4 + $0x68] sm:$0xff]
  %v428 = vld [vmem:[%s4 + $0x70] sm:$0xff]
  %v429 = vld [vmem:[%s4 + $0x78] sm:$0xff]
  %v430 = vld [vmem:[%s4 + $0x80] sm:$0xff]
  %v431 = vld [vmem:[%s4 + $0x88] sm:$0xff]
  %v432 = vld [vmem:[%s4 + $0x90] sm:$0xff]
  %v433 = vld [vmem:[%s4 + $0x98] sm:$0xff]
  %v434 = vld [vmem:[%s4 + $0xa0] sm:$0xff]
  %v435 = vld [vmem:[%s4 + $0xa8] sm:$0xff]
  %v436 = vld [vmem:[%s4 + $0xb0] sm:$0xff]
  %v437 = vld [vmem:[%s4 + $0xb8] sm:$0xff]
  %v438 = vld [vmem:[%s4 + $0xc0] sm:$0xff]
  %v439 = vld [vmem:[%s4 + $0xc8] sm:$0xff]
  %v440 = vld [vmem:[%s4 + $0xd0] sm:$0xff]
  %v441 = vld [vmem:[%s4 + $0xd8] sm:$0xff]
  %v442 = vld [vmem:[%s4 + $0xe0] sm:$0xff]
  %v443 = vld [vmem:[%s4 + $0xe8] sm:$0xff]
  %v444 = vld [vmem:[%s4 + $0xf0] sm:$0xff]
  %v445 = vld [vmem:[%s4 + $0xf8] sm:$0xff]
  %v446 = vld [vmem:[%s4 + $0x100] sm:$0xff]
  %v447 = vld [vmem:[%s4 + $0x108] sm:$0xff]
  %v448 = vld [vmem:[%s4 + $0x110] sm:$0xff]
  %v449 = vld [vmem:[%s4 + $0x118] sm:$0xff]
  %v450 = vld [vmem:[%s4 + $0x120] sm:$0xff]
  %v451 = vld [vmem:[%s4 + $0x128] sm:$0xff]
  %v452 = vld [vmem:[%s4 + $0x130] sm:$0xff]
  %v453 = vld [vmem:[%s4 + $0x138] sm:$0xff]
  %v454 = vld [vmem:[%s4 + $0x140] sm:$0xff]
  %v455 = vld [vmem:[%s4 + $0x148] sm:$0xff]
  %v456 = vld [vmem:[%s4 + $0x150] sm:$0xff]
  %v457 = vld [vmem:[%s4 + $0x158] sm:$0xff]
  %v458 = vld [vmem:[%s4 + $0x160] sm:$0xff]
  %v459 = vld [vmem:[%s4 + $0x168] sm:$0xff]
  %v460 = vld [vmem:[%s4 + $0x170] sm:$0xff]
  %v461 = vld [vmem:[%s4 + $0x178] sm:$0xff]
  %462 = vmatprep.subr.mxu0 0.0
  %463 = vmatpush1.msra.mxu0 %v414
  %464 = vmatprep.subr.mxu0 0.0
  %465 = vmatpush1.msra.mxu0 %v415
  %466 = vmatprep.subr.mxu0 0.0
  %467 = vmatpush1.msra.mxu0 %v416
  %468 = vmatprep.subr.mxu0 0.0
  %469 = vmatpush1.msra.mxu0 %v417
  %470 = vmatprep.subr.mxu0 0.0
  %471 = vmatpush1.msra.mxu0 %v418
  %472 = vmatprep.subr.mxu0 0.0
  %473 = vmatpush1.msra.mxu0 %v419
  %474 = vmatprep.subr.mxu0 0.0
  %475 = vmatpush1.msra.mxu0 %v420
  %476 = vmatprep.subr.mxu0 0.0
  %477 = vmatpush1.msra.mxu0 %v421
  %478 = vmatprep.subr.mxu0 0.0
  %479 = vmatpush1.msra.mxu0 %v422
  %480 = vmatprep.subr.mxu0 0.0
  %481 = vmatpush1.msra.mxu0 %v423
  %482 = vmatprep.subr.mxu0 0.0
  %483 = vmatpush1.msra.mxu0 %v424
  %484 = vmatprep.subr.mxu0 0.0
  %485 = vmatpush1.msra.mxu0 %v425
  %486 = vmatprep.subr.mxu0 0.0
  %487 = vmatpush1.msra.mxu0 %v426
  %488 = vmatprep.subr.mxu0 0.0
  %489 = vmatpush1.msra.mxu0 %v427
  %490 = vmatprep.subr.mxu0 0.0
  %491 = vmatpush1.msra.mxu0 %v428
  %492 = vmatprep.subr.mxu0 0.0
  %493 = vmatpush1.msra.mxu0 %v429
  %494 = vmatprep.subr.mxu0 0.0
  %495 = vmatpush1.msra.mxu0 %v430
  %496 = vmatprep.subr.mxu0 0.0
  %497 = vmatpush1.msra.mxu0 %v431
  %498 = vmatprep.subr.mxu0 0.0
  %499 = vmatpush1.msra.mxu0 %v432
  %500 = vmatprep.subr.mxu0 0.0
  %501 = vmatpush1.msra.mxu0 %v433
  %502 = vmatprep.subr.mxu0 0.0
  %503 = vmatpush1.msra.mxu0 %v434
  %504 = vmatprep.subr.mxu0 0.0
  %505 = vmatpush1.msra.mxu0 %v435
  %506 = vmatprep.subr.mxu0 0.0
  %507 = vmatpush1.msra.mxu0 %v436
  %508 = vmatprep.subr.mxu0 0.0
  %509 = vmatpush1.msra.mxu0 %v437
  %510 = vmatprep.subr.mxu0 0.0
  %511 = vmatpush1.msra.mxu0 %v438
  %512 = vmatprep.subr.mxu0 0.0
  %513 = vmatpush1.msra.mxu0 %v439
  %514 = vmatprep.subr.mxu0 0.0
  %515 = vmatpush1.msra.mxu0 %v440
  %516 = vmatprep.subr.mxu0 0.0
  %517 = vmatpush1.msra.mxu0 %v441
  %518 = vmatprep.subr.mxu0 0.0
  %519 = vmatpush1.msra.mxu0 %v442
  %520 = vmatprep.subr.mxu0 0.0
  %521 = vmatpush1.msra.mxu0 %v443
  %522 = vmatprep.subr.mxu0 0.0
  %523 = vmatpush1.msra.mxu0 %v444
  %524 = vmatprep.subr.mxu0 0.0
  %525 = vmatpush1.msra.mxu0 %v445
  %526 = vmatprep.mubr.f32.mxu0 %v334
  %527 = vmatmul.mubr.f32.gmra.mrb[0].mxu0 %v374
  %v528 = vpop.f32.mrb[0].mxu0
  %v529 = vadd.f32 0.0, %v528
  %v530 = vpop.f32.mrb[0].mxu0
  %531 = vmatprep.mubr.f32.mxu0 %v335
  %532 = vmatmul.mubr.f32.gmra.mrb[0].mxu0 %v375
  %v533 = vpop.f32.mrb[0].mxu0
  %v534 = vadd.f32 0.0, %v533
  %v535 = vpop.f32.mrb[0].mxu0
  %536 = vmatprep.mubr.f32.mxu0 %v336
  %537 = vmatmul.mubr.f32.gmra.mrb[0].mxu0 %v376
  %v538 = vpop.f32.mrb[0].mxu0
  %v539 = vadd.f32 0.0, %v538
  %v540 = vpop.f32.mrb[0].mxu0
  %541 = vmatprep.mubr.f32.mxu0 %v337
  %542 = vmatmul.mubr.f32.gmra.mrb[0].mxu0 %v377
  %v543 = vpop.f32.mrb[0].mxu0
  %v544 = vadd.f32 0.0, %v543
  %v545 = vpop.f32.mrb[0].mxu0
  %546 = vmatprep.mubr.f32.mxu0 %v338
  %547 = vmatmul.mubr.f32.gmra.mrb[0].mxu0 %v378
  %v548 = vpop.f32.mrb[0].mxu0
  %v549 = vadd.f32 0.0, %v548
  %v550 = vpop.f32.mrb[0].mxu0
  %551 = vmatprep.mubr.f32.mxu0 %v339
  %552 = vmatmul.mubr.f32.gmra.mrb[0].mxu0 %v379
  %v553 = vpop.f32.mrb[0].mxu0
  %v554 = vadd.f32 0.0, %v553
  %v555 = vpop.f32.mrb[0].mxu0
  %556 = vmatprep.mubr.f32.mxu0 %v340
  %557 = vmatmul.mubr.f32.gmra.mrb[0].mxu0 %v380
  %v558 = vpop.f32.mrb[0].mxu0
  %v559 = vadd.f32 0.0, %v558
  %v560 = vpop.f32.mrb[0].mxu0
  %561 = vmatprep.mubr.f32.mxu0 %v341
  %562 = vmatmul.mubr.f32.gmra.mrb[0].mxu0 %v381
  %v563 = vpop.f32.mrb[0].mxu0
  %v564 = vadd.f32 0.0, %v563
  %v565 = vpop.f32.mrb[0].mxu0
  %566 = vdwg.mxu0
  %567 = vmatprep.subr.mxu0 0.0
  %568 = vmatpush1.msra.mxu0 %v446
  %569 = vmatprep.subr.mxu0 0.0
  %570 = vmatpush1.msra.mxu0 %v447
  %571 = vmatprep.subr.mxu0 0.0
  %572 = vmatpush1.msra.mxu0 %v448
  %573 = vmatprep.subr.mxu0 0.0
  %574 = vmatpush1.msra.mxu0 %v449
  %575 = vmatprep.subr.mxu0 0.0
  %576 = vmatpush1.msra.mxu0 %v450
  %577 = vmatprep.subr.mxu0 0.0
  %578 = vmatpush1.msra.mxu0 %v451
  %579 = vmatprep.subr.mxu0 0.0
  %580 = vmatpush1.msra.mxu0 %v452
  %581 = vmatprep.subr.mxu0 0.0
  %582 = vmatpush1.msra.mxu0 %v453
  %583 = vmatprep.subr.mxu0 0.0
  %584 = vmatpush1.msra.mxu0 %v454
  %585 = vmatprep.subr.mxu0 0.0
  %586 = vmatpush1.msra.mxu0 %v455
  %587 = vmatprep.subr.mxu0 0.0
  %588 = vmatpush1.msra.mxu0 %v456
  %589 = vmatprep.subr.mxu0 0.0
  %590 = vmatpush1.msra.mxu0 %v457
  %591 = vmatprep.subr.mxu0 0.0
  %592 = vmatpush1.msra.mxu0 %v458
  %593 = vmatprep.subr.mxu0 0.0
  %594 = vmatpush1.msra.mxu0 %v459
  %595 = vmatprep.subr.mxu0 0.0
  %596 = vmatpush1.msra.mxu0 %v460
  %597 = vmatprep.subr.mxu0 0.0
  %598 = vmatpush1.msra.mxu0 %v461
  %599 = vmatprep.subr.mxu0 0.0
  %600 = vmatpush1.msra.mxu0 0.0
  %601 = vmatprep.subr.mxu0 0.0
  %602 = vmatpush1.msra.mxu0 0.0
  %603 = vmatprep.subr.mxu0 0.0
  %604 = vmatpush1.msra.mxu0 0.0
  %605 = vmatprep.subr.mxu0 0.0
  %606 = vmatpush1.msra.mxu0 0.0
  %607 = vmatprep.subr.mxu0 0.0
  %608 = vmatpush1.msra.mxu0 0.0
  %609 = vmatprep.subr.mxu0 0.0
  %610 = vmatpush1.msra.mxu0 0.0
  %611 = vmatprep.subr.mxu0 0.0
  %612 = vmatpush1.msra.mxu0 0.0
  %613 = vmatprep.subr.mxu0 0.0
  %614 = vmatpush1.msra.mxu0 0.0
  %615 = vmatprep.subr.mxu0 0.0
  %616 = vmatpush1.msra.mxu0 0.0
  %617 = vmatprep.subr.mxu0 0.0
  %618 = vmatpush1.msra.mxu0 0.0
  %619 = vmatprep.subr.mxu0 0.0
  %620 = vmatpush1.msra.mxu0 0.0
  %621 = vmatprep.subr.mxu0 0.0
  %622 = vmatpush1.msra.mxu0 0.0
  %623 = vmatprep.subr.mxu0 0.0
  %624 = vmatpush1.msra.mxu0 0.0
  %625 = vmatprep.subr.mxu0 0.0
  %626 = vmatpush1.msra.mxu0 0.0
  %627 = vmatprep.subr.mxu0 0.0
  %628 = vmatpush1.msra.mxu0 0.0
  %629 = vmatprep.subr.mxu0 0.0
  %630 = vmatpush1.msra.mxu0 0.0
  %631 = vmatprep.mubr.f32.mxu0 0.0
  %632 = vmatmul.mubr.f32.gmra.mrb[0].mxu0 %v406
  %v633 = vpop.f32.mrb[0].mxu0
  %v634 = vadd.f32 %v529, %v633
  %v635 = vpop.f32.mrb[0].mxu0
  %636 = vmatprep.mubr.f32.mxu0 0.0
  %637 = vmatmul.mubr.f32.gmra.mrb[0].mxu0 %v407
  %v638 = vpop.f32.mrb[0].mxu0
  %v639 = vadd.f32 %v534, %v638
  %v640 = vpop.f32.mrb[0].mxu0
  %641 = vmatprep.mubr.f32.mxu0 0.0
  %642 = vmatmul.mubr.f32.gmra.mrb[0].mxu0 %v408
  %v643 = vpop.f32.mrb[0].mxu0
  %v644 = vadd.f32 %v539, %v643
  %v645 = vpop.f32.mrb[0].mxu0
  %646 = vmatprep.mubr.f32.mxu0 0.0
  %647 = vmatmul.mubr.f32.gmra.mrb[0].mxu0 %v409
  %v648 = vpop.f32.mrb[0].mxu0
  %v649 = vadd.f32 %v544, %v648
  %v650 = vpop.f32.mrb[0].mxu0
  %651 = vmatprep.mubr.f32.mxu0 0.0
  %652 = vmatmul.mubr.f32.gmra.mrb[0].mxu0 %v410
  %v653 = vpop.f32.mrb[0].mxu0
  %v654 = vadd.f32 %v549, %v653
  %v655 = vpop.f32.mrb[0].mxu0
  %656 = vmatprep.mubr.f32.mxu0 0.0
  %657 = vmatmul.mubr.f32.gmra.mrb[0].mxu0 %v411
  %v658 = vpop.f32.mrb[0].mxu0
  %v659 = vadd.f32 %v554, %v658
  %v660 = vpop.f32.mrb[0].mxu0
  %661 = vmatprep.mubr.f32.mxu0 0.0
  %662 = vmatmul.mubr.f32.gmra.mrb[0].mxu0 %v412
  %v663 = vpop.f32.mrb[0].mxu0
  %v664 = vadd.f32 %v559, %v663
  %v665 = vpop.f32.mrb[0].mxu0
  %666 = vmatprep.mubr.f32.mxu0 0.0
  %667 = vmatmul.mubr.f32.gmra.mrb[0].mxu0 %v413
  %v668 = vpop.f32.mrb[0].mxu0
  %v669 = vadd.f32 %v564, %v668
  %v670 = vpop.f32.mrb[0].mxu0
  %671 = vdwg.mxu0
  %v672 = vld [vmem:[%s6] sm:$0x1]
  %v673 = vld [vmem:[%s7] sm:$0x1]
  %v674 = vadd.f32 %v634, %v639
  %v675 = vadd.f32 %v674, %v644
  %v676 = vadd.f32 %v675, %v649
  %v677 = vadd.f32 %v676, %v654
  %v678 = vadd.f32 %v677, %v659
  %v679 = vadd.f32 %v678, %v664
  %v680 = vadd.f32 %v679, %v669
  %v681 = vrot.slane %v680, 4
  %v682 = vadd.f32 %v680, %v681
  %v683 = vrot.slane %v682, 2
  %v684 = vadd.f32 %v682, %v683
  %v685 = vrot.slane %v684, 1
  %v686 = vadd.f32 %v684, %v685
  %v687 = vmul.f32 %v686, 0.015625
  %v688 = vsub.f32 %v634, %v687
  %v689 = vsub.f32 %v639, %v687
  %v690 = vsub.f32 %v644, %v687
  %v691 = vsub.f32 %v649, %v687
  %v692 = vsub.f32 %v654, %v687
  %v693 = vsub.f32 %v659, %v687
  %v694 = vsub.f32 %v664, %v687
  %v695 = vsub.f32 %v669, %v687
  %v696 = vmul.f32 %v688, %v688
  %v697 = vmul.f32 %v689, %v689
  %v698 = vmul.f32 %v690, %v690
  %v699 = vmul.f32 %v691, %v691
  %v700 = vmul.f32 %v692, %v692
  %v701 = vmul.f32 %v693, %v693
  %v702 = vmul.f32 %v694, %v694
  %v703 = vmul.f32 %v695, %v695
  %v704 = vadd.f32 %v696, %v697
  %v705 = vadd.f32 %v704, %v698
  %v706 = vadd.f32 %v705, %v699
  %v707 = vadd.f32 %v706, %v700
  %v708 = vadd.f32 %v707, %v701
  %v709 = vadd.f32 %v708, %v702
  %v710 = vadd.f32 %v709, %v703
  %v711 = vrot.slane %v710, 4
  %v712 = vadd.f32 %v710, %v711
  %v713 = vrot.slane %v712, 2
  %v714 = vadd.f32 %v712, %v713
  %v715 = vrot.slane %v714, 1
  %v716 = vadd.f32 %v714, %v715
  %v717 = vmul.f32 %v716, 0.015625
  %v718 = vmax.f32 %v717, 0.0
  %v719 = vadd.f32 %v718, 1e-05
  %v720 = vrsqrt.pop %v719
  %v721 = vmul.f32 %v672, %v720
  %v723 = vlaneseq
  %v724 = vshrl.u32 %v723, 7
  %v725 = vsub.s32 0, %v724
  %v726 = vrot.slane %v721, %v725
  %v728 = vmul.f32 %v688, %v726
  %v729 = vmul.f32 %v689, %v726
  %v730 = vmul.f32 %v690, %v726
  %v731 = vmul.f32 %v691, %v726
  %v732 = vmul.f32 %v692, %v726
  %v733 = vmul.f32 %v693, %v726
  %v734 = vmul.f32 %v694, %v726
  %v735 = vmul.f32 %v695, %v726
  %v737 = vlaneseq
  %v738 = vshrl.u32 %v737, 7
  %v739 = vsub.s32 0, %v738
  %v740 = vrot.slane %v673, %v739
  %v742 = vadd.f32 %v728, %v740
  %v743 = vadd.f32 %v729, %v740
  %v744 = vadd.f32 %v730, %v740
  %v745 = vadd.f32 %v731, %v740
  %v746 = vadd.f32 %v732, %v740
  %v747 = vadd.f32 %v733, %v740
  %v748 = vadd.f32 %v734, %v740
  %v749 = vadd.f32 %v735, %v740
  %v750 = vmax.f32 %v742, 0.0
  %v751 = vmax.f32 %v743, 0.0
  %v752 = vmax.f32 %v744, 0.0
  %v753 = vmax.f32 %v745, 0.0
  %v754 = vmax.f32 %v746, 0.0
  %v755 = vmax.f32 %v747, 0.0
  %v756 = vmax.f32 %v748, 0.0
  %v757 = vmax.f32 %v749, 0.0
  %758 = vst [vmem:[#allocation2 + $0x8] sm:$0xff] %v750
  %759 = vst [vmem:[#allocation2 + $0x10] sm:$0xff] %v751
  %760 = vst [vmem:[#allocation2 + $0x18] sm:$0xff] %v752
  %761 = vst [vmem:[#allocation2 + $0x20] sm:$0xff] %v753
  %762 = vst [vmem:[#allocation2 + $0x28] sm:$0xff] %v754
  %763 = vst [vmem:[#allocation2 + $0x30] sm:$0xff] %v755
  %764 = vst [vmem:[#allocation2 + $0x38] sm:$0xff] %v756
  %765 = vst [vmem:[#allocation2 + $0x40] sm:$0xff] %v757
  %v766 = vld [vmem:[#allocation2 + $0x7] sm:$0xff]
  %v767 = vld [vmem:[#allocation2 + $0xf] sm:$0xff]
  %v768 = vld [vmem:[#allocation2 + $0x17] sm:$0xff]
  %v769 = vld [vmem:[#allocation2 + $0x1f] sm:$0xff]
  %v770 = vld [vmem:[#allocation2 + $0x27] sm:$0xff]
  %v771 = vld [vmem:[#allocation2 + $0x2f] sm:$0xff]
  %v772 = vld [vmem:[#allocation2 + $0x37] sm:$0xff]
  %v773 = vld [vmem:[#allocation2 + $0x3f] sm:$0xff]
  %v774 = vsel %vm366, %v766, 0.0
  %v775 = vsel %vm367, %v767, 0.0
  %v776 = vsel %vm368, %v768, 0.0
  %v777 = vsel %vm369, %v769, 0.0
  %v778 = vsel %vm370, %v770, 0.0
  %v779 = vsel %vm371, %v771, 0.0
  %v780 = vsel %vm372, %v772, 0.0
  %v781 = vsel %vm373, %v773, 0.0
  %v782 = vld [vmem:[#allocation2 + $0x9] sm:$0xff]
  %v783 = vld [vmem:[#allocation2 + $0x11] sm:$0xff]
  %v784 = vld [vmem:[#allocation2 + $0x19] sm:$0xff]
  %v785 = vld [vmem:[#allocation2 + $0x21] sm:$0xff]
  %v786 = vld [vmem:[#allocation2 + $0x29] sm:$0xff]
  %v787 = vld [vmem:[#allocation2 + $0x31] sm:$0xff]
  %v788 = vld [vmem:[#allocation2 + $0x39] sm:$0xff]
  %v789 = vld [vmem:[#allocation2 + $0x41] sm:$0xff]
  %v790 = vsel %vm398, %v782, 0.0
  %v791 = vsel %vm399, %v783, 0.0
  %v792 = vsel %vm400, %v784, 0.0
  %v793 = vsel %vm401, %v785, 0.0
  %v794 = vsel %vm402, %v786, 0.0
  %v795 = vsel %vm403, %v787, 0.0
  %v796 = vsel %vm404, %v788, 0.0
  %v797 = vsel %vm405, %v789, 0.0
  %v798 = vld [vmem:[%s5] sm:$0xff]
  %v799 = vld [vmem:[%s5 + $0x8] sm:$0xff]
  %v800 = vld [vmem:[%s5 + $0x10] sm:$0xff]
  %v801 = vld [vmem:[%s5 + $0x18] sm:$0xff]
  %v802 = vld [vmem:[%s5 + $0x20] sm:$0xff]
  %v803 = vld [vmem:[%s5 + $0x28] sm:$0xff]
  %v804 = vld [vmem:[%s5 + $0x30] sm:$0xff]
  %v805 = vld [vmem:[%s5 + $0x38] sm:$0xff]
  %v806 = vld [vmem:[%s5 + $0x40] sm:$0xff]
  %v807 = vld [vmem:[%s5 + $0x48] sm:$0xff]
  %v808 = vld [vmem:[%s5 + $0x50] sm:$0xff]
  %v809 = vld [vmem:[%s5 + $0x58] sm:$0xff]
  %v810 = vld [vmem:[%s5 + $0x60] sm:$0xff]
  %v811 = vld [vmem:[%s5 + $0x68] sm:$0xff]
  %v812 = vld [vmem:[%s5 + $0x70] sm:$0xff]
  %v813 = vld [vmem:[%s5 + $0x78] sm:$0xff]
  %v814 = vld [vmem:[%s5 + $0x80] sm:$0xff]
  %v815 = vld [vmem:[%s5 + $0x88] sm:$0xff]
  %v816 = vld [vmem:[%s5 + $0x90] sm:$0xff]
  %v817 = vld [vmem:[%s5 + $0x98] sm:$0xff]
  %v818 = vld [vmem:[%s5 + $0xa0] sm:$0xff]
  %v819 = vld [vmem:[%s5 + $0xa8] sm:$0xff]
  %v820 = vld [vmem:[%s5 + $0xb0] sm:$0xff]
  %v821 = vld [vmem:[%s5 + $0xb8] sm:$0xff]
  %v822 = vld [vmem:[%s5 + $0xc0] sm:$0xff]
  %v823 = vld [vmem:[%s5 + $0xc8] sm:$0xff]
  %v824 = vld [vmem:[%s5 + $0xd0] sm:$0xff]
  %v825 = vld [vmem:[%s5 + $0xd8] sm:$0xff]
  %v826 = vld [vmem:[%s5 + $0xe0] sm:$0xff]
  %v827 = vld [vmem:[%s5 + $0xe8] sm:$0xff]
  %v828 = vld [vmem:[%s5 + $0xf0] sm:$0xff]
  %v829 = vld [vmem:[%s5 + $0xf8] sm:$0xff]
  %v830 = vld [vmem:[%s5 + $0x100] sm:$0xff]
  %v831 = vld [vmem:[%s5 + $0x108] sm:$0xff]
  %v832 = vld [vmem:[%s5 + $0x110] sm:$0xff]
  %v833 = vld [vmem:[%s5 + $0x118] sm:$0xff]
  %v834 = vld [vmem:[%s5 + $0x120] sm:$0xff]
  %v835 = vld [vmem:[%s5 + $0x128] sm:$0xff]
  %v836 = vld [vmem:[%s5 + $0x130] sm:$0xff]
  %v837 = vld [vmem:[%s5 + $0x138] sm:$0xff]
  %v838 = vld [vmem:[%s5 + $0x140] sm:$0xff]
  %v839 = vld [vmem:[%s5 + $0x148] sm:$0xff]
  %v840 = vld [vmem:[%s5 + $0x150] sm:$0xff]
  %v841 = vld [vmem:[%s5 + $0x158] sm:$0xff]
  %v842 = vld [vmem:[%s5 + $0x160] sm:$0xff]
  %v843 = vld [vmem:[%s5 + $0x168] sm:$0xff]
  %v844 = vld [vmem:[%s5 + $0x170] sm:$0xff]
  %v845 = vld [vmem:[%s5 + $0x178] sm:$0xff]
  %846 = vmatprep.subr.mxu0 0.0
  %847 = vmatpush1.msra.mxu0 %v798
  %848 = vmatprep.subr.mxu0 0.0
  %849 = vmatpush1.msra.mxu0 %v799
  %850 = vmatprep.subr.mxu0 0.0
  %851 = vmatpush1.msra.mxu0 %v800
  %852 = vmatprep.subr.mxu0 0.0
  %853 = vmatpush1.msra.mxu0 %v801
  %854 = vmatprep.subr.mxu0 0.0
  %855 = vmatpush1.msra.mxu0 %v802
  %856 = vmatprep.subr.mxu0 0.0
  %857 = vmatpush1.msra.mxu0 %v803
  %858 = vmatprep.subr.mxu0 0.0
  %859 = vmatpush1.msra.mxu0 %v804
  %860 = vmatprep.subr.mxu0 0.0
  %861 = vmatpush1.msra.mxu0 %v805
  %862 = vmatprep.subr.mxu0 0.0
  %863 = vmatpush1.msra.mxu0 %v806
  %864 = vmatprep.subr.mxu0 0.0
  %865 = vmatpush1.msra.mxu0 %v807
  %866 = vmatprep.subr.mxu0 0.0
  %867 = vmatpush1.msra.mxu0 %v808
  %868 = vmatprep.subr.mxu0 0.0
  %869 = vmatpush1.msra.mxu0 %v809
  %870 = vmatprep.subr.mxu0 0.0
  %871 = vmatpush1.msra.mxu0 %v810
  %872 = vmatprep.subr.mxu0 0.0
  %873 = vmatpush1.msra.mxu0 %v811
  %874 = vmatprep.subr.mxu0 0.0
  %875 = vmatpush1.msra.mxu0 %v812
  %876 = vmatprep.subr.mxu0 0.0
  %877 = vmatpush1.msra.mxu0 %v813
  %878 = vmatprep.subr.mxu0 0.0
  %879 = vmatpush1.msra.mxu0 %v814
  %880 = vmatprep.subr.mxu0 0.0
  %881 = vmatpush1.msra.mxu0 %v815
  %882 = vmatprep.subr.mxu0 0.0
  %883 = vmatpush1.msra.mxu0 %v816
  %884 = vmatprep.subr.mxu0 0.0
  %885 = vmatpush1.msra.mxu0 %v817
  %886 = vmatprep.subr.mxu0 0.0
  %887 = vmatpush1.msra.mxu0 %v818
  %888 = vmatprep.subr.mxu0 0.0
  %889 = vmatpush1.msra.mxu0 %v819
  %890 = vmatprep.subr.mxu0 0.0
  %891 = vmatpush1.msra.mxu0 %v820
  %892 = vmatprep.subr.mxu0 0.0
  %893 = vmatpush1.msra.mxu0 %v821
  %894 = vmatprep.subr.mxu0 0.0
  %895 = vmatpush1.msra.mxu0 %v822
  %896 = vmatprep.subr.mxu0 0.0
  %897 = vmatpush1.msra.mxu0 %v823
  %898 = vmatprep.subr.mxu0 0.0
  %899 = vmatpush1.msra.mxu0 %v824
  %900 = vmatprep.subr.mxu0 0.0
  %901 = vmatpush1.msra.mxu0 %v825
  %902 = vmatprep.subr.mxu0 0.0
  %903 = vmatpush1.msra.mxu0 %v826
  %904 = vmatprep.subr.mxu0 0.0
  %905 = vmatpush1.msra.mxu0 %v827
  %906 = vmatprep.subr.mxu0 0.0
  %907 = vmatpush1.msra.mxu0 %v828
  %908 = vmatprep.subr.mxu0 0.0
  %909 = vmatpush1.msra.mxu0 %v829
  %910 = vmatprep.mubr.f32.mxu0 %v750
  %911 = vmatmul.mubr.f32.gmra.mrb[0].mxu0 %v774
  %v912 = vpop.f32.mrb[0].mxu0
  %v913 = vadd.f32 0.0, %v912
  %v914 = vpop.f32.mrb[0].mxu0
  %915 = vmatprep.mubr.f32.mxu0 %v751
  %916 = vmatmul.mubr.f32.gmra.mrb[0].mxu0 %v775
  %v917 = vpop.f32.mrb[0].mxu0
  %v918 = vadd.f32 0.0, %v917
  %v919 = vpop.f32.mrb[0].mxu0
  %920 = vmatprep.mubr.f32.mxu0 %v752
  %921 = vmatmul.mubr.f32.gmra.mrb[0].mxu0 %v776
  %v922 = vpop.f32.mrb[0].mxu0
  %v923 = vadd.f32 0.0, %v922
  %v924 = vpop.f32.mrb[0].mxu0
  %925 = vmatprep.mubr.f32.mxu0 %v753
  %926 = vmatmul.mubr.f32.gmra.mrb[0].mxu0 %v777
  %v927 = vpop.f32.mrb[0].mxu0
  %v928 = vadd.f32 0.0, %v927
  %v929 = vpop.f32.mrb[0].mxu0
  %930 = vmatprep.mubr.f32.mxu0 %v754
  %931 = vmatmul.mubr.f32.gmra.mrb[0].mxu0 %v778
  %v932 = vpop.f32.mrb[0].mxu0
  %v933 = vadd.f32 0.0, %v932
  %v934 = vpop.f32.mrb[0].mxu0
  %935 = vmatprep.mubr.f32.mxu0 %v755
  %936 = vmatmul.mubr.f32.gmra.mrb[0].mxu0 %v779
  %v937 = vpop.f32.mrb[0].mxu0
  %v938 = vadd.f32 0.0, %v937
  %v939 = vpop.f32.mrb[0].mxu0
  %940 = vmatprep.mubr.f32.mxu0 %v756
  %941 = vmatmul.mubr.f32.gmra.mrb[0].mxu0 %v780
  %v942 = vpop.f32.mrb[0].mxu0
  %v943 = vadd.f32 0.0, %v942
  %v944 = vpop.f32.mrb[0].mxu0
  %945 = vmatprep.mubr.f32.mxu0 %v757
  %946 = vmatmul.mubr.f32.gmra.mrb[0].mxu0 %v781
  %v947 = vpop.f32.mrb[0].mxu0
  %v948 = vadd.f32 0.0, %v947
  %v949 = vpop.f32.mrb[0].mxu0
  %950 = vdwg.mxu0
  %951 = vmatprep.subr.mxu0 0.0
  %952 = vmatpush1.msra.mxu0 %v830
  %953 = vmatprep.subr.mxu0 0.0
  %954 = vmatpush1.msra.mxu0 %v831
  %955 = vmatprep.subr.mxu0 0.0
  %956 = vmatpush1.msra.mxu0 %v832
  %957 = vmatprep.subr.mxu0 0.0
  %958 = vmatpush1.msra.mxu0 %v833
  %959 = vmatprep.subr.mxu0 0.0
  %960 = vmatpush1.msra.mxu0 %v834
  %961 = vmatprep.subr.mxu0 0.0
  %962 = vmatpush1.msra.mxu0 %v835
  %963 = vmatprep.subr.mxu0 0.0
  %964 = vmatpush1.msra.mxu0 %v836
  %965 = vmatprep.subr.mxu0 0.0
  %966 = vmatpush1.msra.mxu0 %v837
  %967 = vmatprep.subr.mxu0 0.0
  %968 = vmatpush1.msra.mxu0 %v838
  %969 = vmatprep.subr.mxu0 0.0
  %970 = vmatpush1.msra.mxu0 %v839
  %971 = vmatprep.subr.mxu0 0.0
  %972 = vmatpush1.msra.mxu0 %v840
  %973 = vmatprep.subr.mxu0 0.0
  %974 = vmatpush1.msra.mxu0 %v841
  %975 = vmatprep.subr.mxu0 0.0
  %976 = vmatpush1.msra.mxu0 %v842
  %977 = vmatprep.subr.mxu0 0.0
  %978 = vmatpush1.msra.mxu0 %v843
  %979 = vmatprep.subr.mxu0 0.0
  %980 = vmatpush1.msra.mxu0 %v844
  %981 = vmatprep.subr.mxu0 0.0
  %982 = vmatpush1.msra.mxu0 %v845
  %983 = vmatprep.subr.mxu0 0.0
  %984 = vmatpush1.msra.mxu0 0.0
  %985 = vmatprep.subr.mxu0 0.0
  %986 = vmatpush1.msra.mxu0 0.0
  %987 = vmatprep.subr.mxu0 0.0
  %988 = vmatpush1.msra.mxu0 0.0
  %989 = vmatprep.subr.mxu0 0.0
  %990 = vmatpush1.msra.mxu0 0.0
  %991 = vmatprep.subr.mxu0 0.0
  %992 = vmatpush1.msra.mxu0 0.0
  %993 = vmatprep.subr.mxu0 0.0
  %994 = vmatpush1.msra.mxu0 0.0
  %995 = vmatprep.subr.mxu0 0.0
  %996 = vmatpush1.msra.mxu0 0.0
  %997 = vmatprep.subr.mxu0 0.0
  %998 = vmatpush1.msra.mxu0 0.0
  %999 = vmatprep.subr.mxu0 0.0
  %1000 = vmatpush1.msra.mxu0 0.0
  %1001 = vmatprep.subr.mxu0 0.0
  %1002 = vmatpush1.msra.mxu0 0.0
  %1003 = vmatprep.subr.mxu0 0.0
  %1004 = vmatpush1.msra.mxu0 0.0
  %1005 = vmatprep.subr.mxu0 0.0
  %1006 = vmatpush1.msra.mxu0 0.0
  %1007 = vmatprep.subr.mxu0 0.0
  %1008 = vmatpush1.msra.mxu0 0.0
  %1009 = vmatprep.subr.mxu0 0.0
  %1010 = vmatpush1.msra.mxu0 0.0
  %1011 = vmatprep.subr.mxu0 0.0
  %1012 = vmatpush1.msra.mxu0 0.0
  %1013 = vmatprep.subr.mxu0 0.0
  %1014 = vmatpush1.msra.mxu0 0.0
  %1015 = vmatprep.mubr.f32.mxu0 0.0
  %1016 = vmatmul.mubr.f32.gmra.mrb[0].mxu0 %v790
  %v1017 = vpop.f32.mrb[0].mxu0
  %v1018 = vadd.f32 %v913, %v1017
  %v1019 = vpop.f32.mrb[0].mxu0
  %1020 = vmatprep.mubr.f32.mxu0 0.0
  %1021 = vmatmul.mubr.f32.gmra.mrb[0].mxu0 %v791
  %v1022 = vpop.f32.mrb[0].mxu0
  %v1023 = vadd.f32 %v918, %v1022
  %v1024 = vpop.f32.mrb[0].mxu0
  %1025 = vmatprep.mubr.f32.mxu0 0.0
  %1026 = vmatmul.mubr.f32.gmra.mrb[0].mxu0 %v792
  %v1027 = vpop.f32.mrb[0].mxu0
  %v1028 = vadd.f32 %v923, %v1027
  %v1029 = vpop.f32.mrb[0].mxu0
  %1030 = vmatprep.mubr.f32.mxu0 0.0
  %1031 = vmatmul.mubr.f32.gmra.mrb[0].mxu0 %v793
  %v1032 = vpop.f32.mrb[0].mxu0
  %v1033 = vadd.f32 %v928, %v1032
  %v1034 = vpop.f32.mrb[0].mxu0
  %1035 = vmatprep.mubr.f32.mxu0 0.0
  %1036 = vmatmul.mubr.f32.gmra.mrb[0].mxu0 %v794
  %v1037 = vpop.f32.mrb[0].mxu0
  %v1038 = vadd.f32 %v933, %v1037
  %v1039 = vpop.f32.mrb[0].mxu0
  %1040 = vmatprep.mubr.f32.mxu0 0.0
  %1041 = vmatmul.mubr.f32.gmra.mrb[0].mxu0 %v795
  %v1042 = vpop.f32.mrb[0].mxu0
  %v1043 = vadd.f32 %v938, %v1042
  %v1044 = vpop.f32.mrb[0].mxu0
  %1045 = vmatprep.mubr.f32.mxu0 0.0
  %1046 = vmatmul.mubr.f32.gmra.mrb[0].mxu0 %v796
  %v1047 = vpop.f32.mrb[0].mxu0
  %v1048 = vadd.f32 %v943, %v1047
  %v1049 = vpop.f32.mrb[0].mxu0
  %1050 = vmatprep.mubr.f32.mxu0 0.0
  %1051 = vmatmul.mubr.f32.gmra.mrb[0].mxu0 %v797
  %v1052 = vpop.f32.mrb[0].mxu0
  %v1053 = vadd.f32 %v948, %v1052
  %v1054 = vpop.f32.mrb[0].mxu0
  %1055 = vdwg.mxu0
  %v1056 = vld [vmem:[%s8] sm:$0x1]
  %v1057 = vld [vmem:[%s9] sm:$0x1]
  %v1058 = vadd.f32 %v1018, %v1023
  %v1059 = vadd.f32 %v1058, %v1028
  %v1060 = vadd.f32 %v1059, %v1033
  %v1061 = vadd.f32 %v1060, %v1038
  %v1062 = vadd.f32 %v1061, %v1043
  %v1063 = vadd.f32 %v1062, %v1048
  %v1064 = vadd.f32 %v1063, %v1053
  %v1065 = vrot.slane %v1064, 4
  %v1066 = vadd.f32 %v1064, %v1065
  %v1067 = vrot.slane %v1066, 2
  %v1068 = vadd.f32 %v1066, %v1067
  %v1069 = vrot.slane %v1068, 1
  %v1070 = vadd.f32 %v1068, %v1069
  %v1071 = vmul.f32 %v1070, 0.015625
  %v1072 = vsub.f32 %v1018, %v1071
  %v1073 = vsub.f32 %v1023, %v1071
  %v1074 = vsub.f32 %v1028, %v1071
  %v1075 = vsub.f32 %v1033, %v1071
  %v1076 = vsub.f32 %v1038, %v1071
  %v1077 = vsub.f32 %v1043, %v1071
  %v1078 = vsub.f32 %v1048, %v1071
  %v1079 = vsub.f32 %v1053, %v1071
  %v1080 = vmul.f32 %v1072, %v1072
  %v1081 = vmul.f32 %v1073, %v1073
  %v1082 = vmul.f32 %v1074, %v1074
  %v1083 = vmul.f32 %v1075, %v1075
  %v1084 = vmul.f32 %v1076, %v1076
  %v1085 = vmul.f32 %v1077, %v1077
  %v1086 = vmul.f32 %v1078, %v1078
  %v1087 = vmul.f32 %v1079, %v1079
  %v1088 = vadd.f32 %v1080, %v1081
  %v1089 = vadd.f32 %v1088, %v1082
  %v1090 = vadd.f32 %v1089, %v1083
  %v1091 = vadd.f32 %v1090, %v1084
  %v1092 = vadd.f32 %v1091, %v1085
  %v1093 = vadd.f32 %v1092, %v1086
  %v1094 = vadd.f32 %v1093, %v1087
  %v1095 = vrot.slane %v1094, 4
  %v1096 = vadd.f32 %v1094, %v1095
  %v1097 = vrot.slane %v1096, 2
  %v1098 = vadd.f32 %v1096, %v1097
  %v1099 = vrot.slane %v1098, 1
  %v1100 = vadd.f32 %v1098, %v1099
  %v1101 = vmul.f32 %v1100, 0.015625
  %v1102 = vmax.f32 %v1101, 0.0
  %v1103 = vadd.f32 %v1102, 1e-05
  %v1104 = vrsqrt.pop %v1103
  %v1105 = vmul.f32 %v1056, %v1104
  %v1107 = vlaneseq
  %v1108 = vshrl.u32 %v1107, 7
  %v1109 = vsub.s32 0, %v1108
  %v1110 = vrot.slane %v1105, %v1109
  %v1112 = vmul.f32 %v1072, %v1110
  %v1113 = vmul.f32 %v1073, %v1110
  %v1114 = vmul.f32 %v1074, %v1110
  %v1115 = vmul.f32 %v1075, %v1110
  %v1116 = vmul.f32 %v1076, %v1110
  %v1117 = vmul.f32 %v1077, %v1110
  %v1118 = vmul.f32 %v1078, %v1110
  %v1119 = vmul.f32 %v1079, %v1110
  %v1121 = vlaneseq
  %v1122 = vshrl.u32 %v1121, 7
  %v1123 = vsub.s32 0, %v1122
  %v1124 = vrot.slane %v1057, %v1123
  %v1126 = vadd.f32 %v1112, %v1124
  %v1127 = vadd.f32 %v1113, %v1124
  %v1128 = vadd.f32 %v1114, %v1124
  %v1129 = vadd.f32 %v1115, %v1124
  %v1130 = vadd.f32 %v1116, %v1124
  %v1131 = vadd.f32 %v1117, %v1124
  %v1132 = vadd.f32 %v1118, %v1124
  %v1133 = vadd.f32 %v1119, %v1124
  %v1134 = vmax.f32 %v1126, 0.0
  %v1135 = vmax.f32 %v1127, 0.0
  %v1136 = vmax.f32 %v1128, 0.0
  %v1137 = vmax.f32 %v1129, 0.0
  %v1138 = vmax.f32 %v1130, 0.0
  %v1139 = vmax.f32 %v1131, 0.0
  %v1140 = vmax.f32 %v1132, 0.0
  %v1141 = vmax.f32 %v1133, 0.0
  %1142 = vst [vmem:[%s10] sm:$0xff] %v1134
  %1143 = vst [vmem:[%s10 + $0x8] sm:$0xff] %v1135
  %1144 = vst [vmem:[%s10 + $0x10] sm:$0xff] %v1136
  %1145 = vst [vmem:[%s10 + $0x18] sm:$0xff] %v1137
  %1146 = vst [vmem:[%s10 + $0x20] sm:$0xff] %v1138
  %1147 = vst [vmem:[%s10 + $0x28] sm:$0xff] %v1139
  %1148 = vst [vmem:[%s10 + $0x30] sm:$0xff] %v1140
  %1149 = vst [vmem:[%s10 + $0x38] sm:$0xff] %v1141
  // Predicated region
  $region42: #{up_block_1d.1} parent=0 // pred_check
    _
  $region43: #{up_block_1d.1} parent=0 // pred_check_branch
    %1151 = sbr.rel (0) target = $region45
  $region44: #{up_block_1d.1} parent=0 // pred_region
    _
  $region45: #{up_block_1d.1} parent=0 // pred_fallthru
    _
  // Predicated region
  $region46: #{up_block_1d.1} parent=0 // pred_check
    _
  $region47: #{up_block_1d.1} parent=0 // pred_check_branch
    %1153 = sbr.rel (0) target = $region49
  $region48: #{up_block_1d.1} parent=0 // pred_region
    _
  $region49: #{up_block_1d.1} parent=0 // pred_fallthru
    _

</llo_original>
